<compile_context>
chip_gen: v7x
topology: tpu7x:2x2x1
jax: 0.10.0
libtpu: 0.0.40
codegen_flags: <defaults>
</compile_context>

<pallas_src>
import jax
import jax.numpy as jnp
from jax.experimental import pallas as pl
from jax.experimental.pallas import tpu as pltpu

TOK_BLK_MAX = 256                      # <=512 keeps double-buffered out tiles small on v7x
_VMEM_TABLE_BUDGET_BYTES = 24 << 20    # resident-table path only if table fits (v7x: 64 MiB phys)
_VMEM_LIMIT_BYTES = 32 << 20           # explicit scoped VMEM limit (safe on v5e/v6e/v7x)


def _round_up(x: int, m: int) -> int:
    return (x + m - 1) // m * m


# ----------------------------------------------------------------------------
# Fast path: whole table resident in VMEM; lookup == one-hot matmul on the MXU.
# ----------------------------------------------------------------------------
def _onehot_embed_kernel(ids_ref, tab_ref, out_ref):
    ids = ids_ref[...]                                        # (TOK_BLK, 1) int32
    tb = ids.shape[0]
    v = tab_ref.shape[0]
    col = jax.lax.broadcasted_iota(jnp.int32, (tb, v), 1)     # (TOK_BLK, V)
    onehot = (ids == col).astype(tab_ref.dtype)               # exact 0/1 rows
    # For an f32 table force full-precision MXU passes so the "gather" is exact;
    # for bf16 the default path is already exact (1.0 * x accumulated in f32).
    prec = jax.lax.Precision.HIGHEST if tab_ref.dtype == jnp.float32 else None
    acc = jnp.dot(onehot, tab_ref[...],
                  preferred_element_type=jnp.float32, precision=prec)
    out_ref[...] = acc.astype(out_ref.dtype)                  # (TOK_BLK, D)


def _embedding_onehot(table, ids_2d, out_dtype, tok_blk):
    n_pad = ids_2d.shape[0]
    v, d = table.shape
    return pl.pallas_call(
        _onehot_embed_kernel,
        out_shape=jax.ShapeDtypeStruct((n_pad, d), out_dtype),
        grid_spec=pltpu.PrefetchScalarGridSpec(
            num_scalar_prefetch=0,
            grid=(n_pad // tok_blk,),
            in_specs=[
                # Token ids for this block: sublane-dense (TOK_BLK, 1) int32 tile.
                pl.BlockSpec((tok_blk, 1), lambda i: (i, 0)),
                # Full table, same block index every step -> DMA'd from HBM once,
                # then stays resident in VMEM across the whole grid.
                pl.BlockSpec((v, d), lambda i: (0, 0)),
            ],
            # Lane/sublane-dense output tile: unmasked stores + large writeback DMAs.
            out_specs=pl.BlockSpec((tok_blk, d), lambda i: (i, 0)),
        ),
        compiler_params=pltpu.CompilerParams(
            dimension_semantics=("parallel",),        # independent token blocks (v7x 2 TCs)
            vmem_limit_bytes=_VMEM_LIMIT_BYTES,
        ),
    )(ids_2d, table)


# ----------------------------------------------------------------------------
# Fallback: large-vocab table that does not fit VMEM -> scalar-prefetch gather.
# ----------------------------------------------------------------------------
def _row_gather_kernel(ids_smem, row_ref, out_ref):
    del ids_smem                                   # only consumed by the index_map
    out_ref[...] = row_ref[...].astype(out_ref.dtype)


def _embedding_gather(table, flat_ids, out_dtype):
    # TODO(synk): upgrade this path to a token-blocked manual-DMA gather
    # (table in memory_space=pl.ANY + make_async_copy per row into a VMEM tile)
    # to amortize per-grid-step overhead for huge vocabularies.
    n_tokens = flat_ids.shape[0]
    _, d = table.shape
    return pl.pallas_call(
        _row_gather_kernel,
        out_shape=jax.ShapeDtypeStruct((n_tokens, d), out_dtype),
        grid_spec=pltpu.PrefetchScalarGridSpec(
            num_scalar_prefetch=1,                  # flat_ids -> SMEM, feeds index_map
            grid=(n_tokens,),
            in_specs=[pl.BlockSpec((1, d), lambda i, ids: (ids[i], 0))],
            out_specs=pl.BlockSpec((1, d), lambda i, ids: (i, 0)),
        ),
        compiler_params=pltpu.CompilerParams(
            dimension_semantics=("arbitrary",),
        ),
    )(flat_ids, table)


def embedding_lookup(table: jax.Array, flat_ids: jax.Array, out_dtype) -> jax.Array:
    """Gather rows of `table` at `flat_ids`, returned in `out_dtype`."""
    n_tokens = flat_ids.shape[0]
    v, d = table.shape
    ids = jnp.clip(flat_ids.astype(jnp.int32), 0, v - 1)       # bounds safety

    table_bytes = v * d * jnp.dtype(table.dtype).itemsize
    if table_bytes <= _VMEM_TABLE_BUDGET_BYTES:
        # Token-blocked one-hot MXU path.
        tok_blk = min(TOK_BLK_MAX, _round_up(n_tokens, 8))
        n_pad = _round_up(n_tokens, tok_blk)
        ids_2d = jnp.pad(ids, (0, n_pad - n_tokens)).reshape(n_pad, 1)
        out = _embedding_onehot(table, ids_2d, out_dtype, tok_blk)
        return out[:n_tokens]
    return _embedding_gather(table, ids, out_dtype)


class Embedding:
    """JAX/Pallas port of the PyTorch `Embedding` wrapper module."""

    def __init__(self, embed_table: jax.Array, using_bf16: bool = False):
        self.bf16 = using_bf16
        self.embed_table = (
            embed_table.astype(jnp.bfloat16) if using_bf16 else embed_table
        )
        # The PyTorch forward hard-codes .view(-1, 1, 4096).
        assert self.embed_table.shape[1] == 4096, (
            "Embedding module spec requires hidden size 4096"
        )

    def __call__(self, input_ids: jax.Array) -> jax.Array:
        flat_ids = input_ids.reshape(-1).astype(jnp.int32)
        # bf16 storage: lookup in bf16, produce float32 (matches `res.float()`).
        out_dtype = jnp.float32 if self.bf16 else self.embed_table.dtype
        res = embedding_lookup(self.embed_table, flat_ids, out_dtype)
        return res.reshape(-1, 1, 4096)


if __name__ == "__main__":
    VOCAB = 128
    HIDDEN = 4096          # fixed by the module's .view(-1, 1, 4096)
    BATCH, SEQ = 2, 8

    key = jax.random.PRNGKey(0)
    k_tab, k_ids = jax.random.split(key)

    table_f32 = jax.random.normal(k_tab, (VOCAB, HIDDEN), dtype=jnp.float32)
    input_ids = jax.random.randint(k_ids, (BATCH, SEQ), 0, VOCAB, dtype=jnp.int32)

    model = Embedding(table_f32, using_bf16=True)
    out = model(input_ids)
    out = jax.block_until_ready(out)

    # Reference: plain-JAX gather with the same bf16 round-trip.
    ref = table_f32.astype(jnp.bfloat16)[input_ids.reshape(-1)].astype(jnp.float32)
    ref = ref.reshape(-1, 1, HIDDEN)

    assert out.shape == (BATCH * SEQ, 1, HIDDEN), out.shape
    assert out.dtype == jnp.float32, out.dtype
    assert jnp.allclose(out, ref), "mismatch vs reference gather"

    print("KERNEL_OK")
</pallas_src>

<mosaic_0001>
module attributes {stable_mosaic.version = 11 : i64} {
  func.func @_onehot_embed_kernel(%arg0: i32, %arg1: memref<16x1xi32, #tpu.memory_space<vmem>>, %arg2: memref<128x4096xbf16, #tpu.memory_space<vmem>>, %arg3: memref<16x4096xf32, #tpu.memory_space<vmem>>) attributes {dimension_semantics = [#tpu.dimension_semantics<parallel>], iteration_bounds = array<i64: 1>, scalar_prefetch = 0 : i64, scratch_operands = 0 : i64, tpu.core_type = #tpu.core_type<tc>, window_params = [{transform_indices = @transform_0, window_bounds = array<i64: 16, 1>}, {pipeline_mode = #tpu.pipeline_mode<synchronous>, transform_indices = @transform_1, window_bounds = array<i64: 128, 4096>}, {transform_indices = @transform_2, window_bounds = array<i64: 16, 4096>}]} {
    %c0 = arith.constant 0 : index
    %c0_0 = arith.constant 0 : index
    %0 = vector.load %arg1[%c0, %c0_0] : memref<16x1xi32, #tpu.memory_space<vmem>>, vector<16x1xi32>
    %1 = tpu.iota {dimensions = array<i32: 1>} : vector<16x128xi32>
    %2 = vector.broadcast %0 : vector<16x1xi32> to vector<16x128xi32>
    %3 = arith.cmpi eq, %2, %1 : vector<16x128xi32>
    %4 = arith.extui %3 : vector<16x128xi1> to vector<16x128xi32>
    %5 = arith.sitofp %4 : vector<16x128xi32> to vector<16x128xf32>
    %6 = arith.truncf %5 : vector<16x128xf32> to vector<16x128xbf16>
    %c0_1 = arith.constant 0 : index
    %c0_2 = arith.constant 0 : index
    %7 = vector.load %arg2[%c0_1, %c0_2] : memref<128x4096xbf16, #tpu.memory_space<vmem>>, vector<128x4096xbf16>
    %cst = arith.constant dense<0.000000e+00> : vector<16x4096xf32>
    %8 = tpu.matmul %6, %7, %cst {dimension_numbers = #tpu.dot_dimension_numbers<[1], [0], [0], [1], [0, 0, 1, 1], [], []>} : vector<16x128xbf16>, vector<128x4096xbf16>, vector<16x4096xf32> -> vector<16x4096xf32>
    %c0_3 = arith.constant 0 : index
    %c0_4 = arith.constant 0 : index
    %9 = vector.load %arg3[%c0_3, %c0_4] : memref<16x4096xf32, #tpu.memory_space<vmem>>, vector<16x4096xf32>
    tpu.vector_store %arg3[%c0_3, %c0_4], %8 {strides = array<i32>} : memref<16x4096xf32, #tpu.memory_space<vmem>>, vector<16x4096xf32>,
    return
  }
  func.func @transform_0(%arg0: i32) -> (i32, i32) {
    %c0_i32 = arith.constant 0 : i32
    %c0_i32_0 = arith.constant 0 : i32
    return %arg0, %c0_i32 : i32, i32
  }
  func.func @transform_1(%arg0: i32) -> (i32, i32) {
    %c0_i32 = arith.constant 0 : i32
    %c0_i32_0 = arith.constant 0 : i32
    %c0_i32_1 = arith.constant 0 : i32
    return %c0_i32, %c0_i32_0 : i32, i32
  }
  func.func @transform_2(%arg0: i32) -> (i32, i32) {
    %c0_i32 = arith.constant 0 : i32
    %c0_i32_0 = arith.constant 0 : i32
    return %arg0, %c0_i32 : i32, i32
  }
}

</mosaic_0001>

<llo_original>
// kernel: tpu_custom_call.1
$region0: #{tpu_custom_call.1}
  #allocation0 [shape = 'u32[]', space=smem, size = 0x4, offset = 0x4, fixed_abs, tag = 'smem constant byte address 0x4 - core index']
  #allocation1 [shape = 'u32[144,128]{1,0:T(1,128)}', space=vmem, size = 0x12000, scoped, tag = 'internal scratch']
  %s0 = inlined_call_operand.vmem [shape: s32[16,1], index: 0, kind: input, shape index: {}]
  %s1 = inlined_call_operand.hbm [shape: bf16[128,4096], index: 1, kind: input, shape index: {}]
  %s2 = inlined_call_operand.hbm [shape: f32[16,4096], index: 2, kind: output, shape index: {}]
  %s3 = sld [smem:[#allocation0]]
  $region22: #{tpu_custom_call.1} parent=0
    _
  %s5 = ssub.s32 1, %s3
  %s6 = scalar_select 0, %s5, %s3
  $region1: #{tpu_custom_call.1} parent=0
    #allocation2 [shape = 'u8[1048576]{0}', space=vmem, size = 0x100000, scoped, tag = 'input window, operand 1, single buffered']
    #allocation3 [shape = 's32[1]{0}', space=sflag, size = 0x4, scoped, tag = 'scoped memory for tpu_custom_call.1']
    #allocation4 [shape = 's32[1]{0}', space=sflag, size = 0x4, scoped, tag = 'scoped memory for tpu_custom_call.1']
    #allocation5 [shape = 'u8[262144]{0}', space=vmem, size = 0x40000, scoped, tag = 'output window, operand 0, single buffered']
    %7 = vsyncpa [#allocation3], 0
    %8 = vsyncpa [#allocation4], 0
    // Predicated region
    $region2: #{tpu_custom_call.1} parent=1 // pred_check
      _
    $region3: #{tpu_custom_call.1} parent=1 // pred_check_branch
      %10 = sbr.rel (0) target = $region5
    $region4: #{tpu_custom_call.1} parent=1 // pred_region
      _
    $region5: #{tpu_custom_call.1} parent=1 // pred_fallthru
      _
    // Predicated region
    $region6: #{tpu_custom_call.1} parent=1 // pred_check
      _
    $region7: #{tpu_custom_call.1} parent=1 // pred_check_branch
      %12 = sbr.rel (0) target = $region9
    $region8: #{tpu_custom_call.1} parent=1 // pred_region
      %s14 = ssub.s32 32768, 32768
      %15 = vsyncadd [#allocation3], %s14
      %s16 = sshll.u32 [#allocation2], 4
      %s17 = int_to_ptr.vmem [resolvable:$true] %s16
      %22 = dma.hbm_to_vmem [thread:$0]  %s1, 32768, %s17, [#allocation3], 2048, 2048, 128
    $region9: #{tpu_custom_call.1} parent=1 // pred_fallthru
      _
    // Predicated region
    $region10: #{tpu_custom_call.1} parent=1 // pred_check
      _
    $region11: #{tpu_custom_call.1} parent=1 // pred_check_branch
      %24 = sbr.rel (0) target = $region13
    $region12: #{tpu_custom_call.1} parent=1 // pred_region
      %25 = dma.done [#allocation3], 32768
    $region13: #{tpu_custom_call.1} parent=1 // pred_fallthru
      _
    %v27 = vld [vmem:[%s0] sm:$0xff]
    %v28 = vld [vmem:[%s0 + $0x8] sm:$0xff]
    %v29 = vlaneseq
    %v30 = vand.u32 %v29, 127
    %31 = vset.pattern.permute.xlu0 0
    %32 = vperm.xlu0 %31, %v27
    %v33 = vpop.permute.xlu0 %32
    %34 = vset.pattern.permute.xlu0 0
    %35 = vperm.xlu0 %34, %v28
    %v36 = vpop.permute.xlu0 %35
    %vm37 = vcmp.eq.s32.totalorder %v33, %v30
    %vm38 = vcmp.eq.s32.totalorder %v36, %v30
    %v39 = vsel %vm37, 1, 0
    %v40 = vsel %vm38, 1, 0
    %v41 = vcvt.s32.f32 %v39
    %v42 = vcvt.s32.f32 %v40
    %v43 = vpack.c.bf16 %v42, %v41
    %v44 = vld [vmem:[#allocation2] sm:$0xff]
    %v45 = vld [vmem:[#allocation2 + $0x8] sm:$0xff]
    %v46 = vld [vmem:[#allocation2 + $0x10] sm:$0xff]
    %v47 = vld [vmem:[#allocation2 + $0x18] sm:$0xff]
    %v48 = vld [vmem:[#allocation2 + $0x20] sm:$0xff]
    %v49 = vld [vmem:[#allocation2 + $0x28] sm:$0xff]
    %v50 = vld [vmem:[#allocation2 + $0x30] sm:$0xff]
    %v51 = vld [vmem:[#allocation2 + $0x38] sm:$0xff]
    %v52 = vld [vmem:[#allocation2 + $0x40] sm:$0xff]
    %v53 = vld [vmem:[#allocation2 + $0x48] sm:$0xff]
    %v54 = vld [vmem:[#allocation2 + $0x50] sm:$0xff]
    %v55 = vld [vmem:[#allocation2 + $0x58] sm:$0xff]
    %v56 = vld [vmem:[#allocation2 + $0x60] sm:$0xff]
    %v57 = vld [vmem:[#allocation2 + $0x68] sm:$0xff]
    %v58 = vld [vmem:[#allocation2 + $0x70] sm:$0xff]
    %v59 = vld [vmem:[#allocation2 + $0x78] sm:$0xff]
    %v60 = vld [vmem:[#allocation2 + $0x80] sm:$0xff]
    %v61 = vld [vmem:[#allocation2 + $0x88] sm:$0xff]
    %v62 = vld [vmem:[#allocation2 + $0x90] sm:$0xff]
    %v63 = vld [vmem:[#allocation2 + $0x98] sm:$0xff]
    %v64 = vld [vmem:[#allocation2 + $0xa0] sm:$0xff]
    %v65 = vld [vmem:[#allocation2 + $0xa8] sm:$0xff]
    %v66 = vld [vmem:[#allocation2 + $0xb0] sm:$0xff]
    %v67 = vld [vmem:[#allocation2 + $0xb8] sm:$0xff]
    %v68 = vld [vmem:[#allocation2 + $0xc0] sm:$0xff]
    %v69 = vld [vmem:[#allocation2 + $0xc8] sm:$0xff]
    %v70 = vld [vmem:[#allocation2 + $0xd0] sm:$0xff]
    %v71 = vld [vmem:[#allocation2 + $0xd8] sm:$0xff]
    %v72 = vld [vmem:[#allocation2 + $0xe0] sm:$0xff]
    %v73 = vld [vmem:[#allocation2 + $0xe8] sm:$0xff]
    %v74 = vld [vmem:[#allocation2 + $0xf0] sm:$0xff]
    %v75 = vld [vmem:[#allocation2 + $0xf8] sm:$0xff]
    %v76 = vld [vmem:[#allocation2 + $0x100] sm:$0xff]
    %v77 = vld [vmem:[#allocation2 + $0x108] sm:$0xff]
    %v78 = vld [vmem:[#allocation2 + $0x110] sm:$0xff]
    %v79 = vld [vmem:[#allocation2 + $0x118] sm:$0xff]
    %v80 = vld [vmem:[#allocation2 + $0x120] sm:$0xff]
    %v81 = vld [vmem:[#allocation2 + $0x128] sm:$0xff]
    %v82 = vld [vmem:[#allocation2 + $0x130] sm:$0xff]
    %v83 = vld [vmem:[#allocation2 + $0x138] sm:$0xff]
    %v84 = vld [vmem:[#allocation2 + $0x140] sm:$0xff]
    %v85 = vld [vmem:[#allocation2 + $0x148] sm:$0xff]
    %v86 = vld [vmem:[#allocation2 + $0x150] sm:$0xff]
    %v87 = vld [vmem:[#allocation2 + $0x158] sm:$0xff]
    %v88 = vld [vmem:[#allocation2 + $0x160] sm:$0xff]
    %v89 = vld [vmem:[#allocation2 + $0x168] sm:$0xff]
    %v90 = vld [vmem:[#allocation2 + $0x170] sm:$0xff]
    %v91 = vld [vmem:[#allocation2 + $0x178] sm:$0xff]
    %v92 = vld [vmem:[#allocation2 + $0x180] sm:$0xff]
    %v93 = vld [vmem:[#allocation2 + $0x188] sm:$0xff]
    %v94 = vld [vmem:[#allocation2 + $0x190] sm:$0xff]
    %v95 = vld [vmem:[#allocation2 + $0x198] sm:$0xff]
    %v96 = vld [vmem:[#allocation2 + $0x1a0] sm:$0xff]
    %v97 = vld [vmem:[#allocation2 + $0x1a8] sm:$0xff]
    %v98 = vld [vmem:[#allocation2 + $0x1b0] sm:$0xff]
    %v99 = vld [vmem:[#allocation2 + $0x1b8] sm:$0xff]
    %v100 = vld [vmem:[#allocation2 + $0x1c0] sm:$0xff]
    %v101 = vld [vmem:[#allocation2 + $0x1c8] sm:$0xff]
    %v102 = vld [vmem:[#allocation2 + $0x1d0] sm:$0xff]
    %v103 = vld [vmem:[#allocation2 + $0x1d8] sm:$0xff]
    %v104 = vld [vmem:[#allocation2 + $0x1e0] sm:$0xff]
    %v105 = vld [vmem:[#allocation2 + $0x1e8] sm:$0xff]
    %v106 = vld [vmem:[#allocation2 + $0x1f0] sm:$0xff]
    %v107 = vld [vmem:[#allocation2 + $0x1f8] sm:$0xff]
    %v108 = vld [vmem:[#allocation2 + $0x200] sm:$0xff]
    %v109 = vld [vmem:[#allocation2 + $0x208] sm:$0xff]
    %v110 = vld [vmem:[#allocation2 + $0x210] sm:$0xff]
    %v111 = vld [vmem:[#allocation2 + $0x218] sm:$0xff]
    %v112 = vld [vmem:[#allocation2 + $0x220] sm:$0xff]
    %v113 = vld [vmem:[#allocation2 + $0x228] sm:$0xff]
    %v114 = vld [vmem:[#allocation2 + $0x230] sm:$0xff]
    %v115 = vld [vmem:[#allocation2 + $0x238] sm:$0xff]
    %v116 = vld [vmem:[#allocation2 + $0x240] sm:$0xff]
    %v117 = vld [vmem:[#allocation2 + $0x248] sm:$0xff]
    %v118 = vld [vmem:[#allocation2 + $0x250] sm:$0xff]
    %v119 = vld [vmem:[#allocation2 + $0x258] sm:$0xff]
    %v120 = vld [vmem:[#allocation2 + $0x260] sm:$0xff]
    %v121 = vld [vmem:[#allocation2 + $0x268] sm:$0xff]
    %v122 = vld [vmem:[#allocation2 + $0x270] sm:$0xff]
    %v123 = vld [vmem:[#allocation2 + $0x278] sm:$0xff]
    %v124 = vld [vmem:[#allocation2 + $0x280] sm:$0xff]
    %v125 = vld [vmem:[#allocation2 + $0x288] sm:$0xff]
    %v126 = vld [vmem:[#allocation2 + $0x290] sm:$0xff]
    %v127 = vld [vmem:[#allocation2 + $0x298] sm:$0xff]
    %v128 = vld [vmem:[#allocation2 + $0x2a0] sm:$0xff]
    %v129 = vld [vmem:[#allocation2 + $0x2a8] sm:$0xff]
    %v130 = vld [vmem:[#allocation2 + $0x2b0] sm:$0xff]
    %v131 = vld [vmem:[#allocation2 + $0x2b8] sm:$0xff]
    %v132 = vld [vmem:[#allocation2 + $0x2c0] sm:$0xff]
    %v133 = vld [vmem:[#allocation2 + $0x2c8] sm:$0xff]
    %v134 = vld [vmem:[#allocation2 + $0x2d0] sm:$0xff]
    %v135 = vld [vmem:[#allocation2 + $0x2d8] sm:$0xff]
    %v136 = vld [vmem:[#allocation2 + $0x2e0] sm:$0xff]
    %v137 = vld [vmem:[#allocation2 + $0x2e8] sm:$0xff]
    %v138 = vld [vmem:[#allocation2 + $0x2f0] sm:$0xff]
    %v139 = vld [vmem:[#allocation2 + $0x2f8] sm:$0xff]
    %v140 = vld [vmem:[#allocation2 + $0x300] sm:$0xff]
    %v141 = vld [vmem:[#allocation2 + $0x308] sm:$0xff]
    %v142 = vld [vmem:[#allocation2 + $0x310] sm:$0xff]
    %v143 = vld [vmem:[#allocation2 + $0x318] sm:$0xff]
    %v144 = vld [vmem:[#allocation2 + $0x320] sm:$0xff]
    %v145 = vld [vmem:[#allocation2 + $0x328] sm:$0xff]
    %v146 = vld [vmem:[#allocation2 + $0x330] sm:$0xff]
    %v147 = vld [vmem:[#allocation2 + $0x338] sm:$0xff]
    %v148 = vld [vmem:[#allocation2 + $0x340] sm:$0xff]
    %v149 = vld [vmem:[#allocation2 + $0x348] sm:$0xff]
    %v150 = vld [vmem:[#allocation2 + $0x350] sm:$0xff]
    %v151 = vld [vmem:[#allocation2 + $0x358] sm:$0xff]
    %v152 = vld [vmem:[#allocation2 + $0x360] sm:$0xff]
    %v153 = vld [vmem:[#allocation2 + $0x368] sm:$0xff]
    %v154 = vld [vmem:[#allocation2 + $0x370] sm:$0xff]
    %v155 = vld [vmem:[#allocation2 + $0x378] sm:$0xff]
    %v156 = vld [vmem:[#allocation2 + $0x380] sm:$0xff]
    %v157 = vld [vmem:[#allocation2 + $0x388] sm:$0xff]
    %v158 = vld [vmem:[#allocation2 + $0x390] sm:$0xff]
    %v159 = vld [vmem:[#allocation2 + $0x398] sm:$0xff]
    %v160 = vld [vmem:[#allocation2 + $0x3a0] sm:$0xff]
    %v161 = vld [vmem:[#allocation2 + $0x3a8] sm:$0xff]
    %v162 = vld [vmem:[#allocation2 + $0x3b0] sm:$0xff]
    %v163 = vld [vmem:[#allocation2 + $0x3b8] sm:$0xff]
    %v164 = vld [vmem:[#allocation2 + $0x3c0] sm:$0xff]
    %v165 = vld [vmem:[#allocation2 + $0x3c8] sm:$0xff]
    %v166 = vld [vmem:[#allocation2 + $0x3d0] sm:$0xff]
    %v167 = vld [vmem:[#allocation2 + $0x3d8] sm:$0xff]
    %v168 = vld [vmem:[#allocation2 + $0x3e0] sm:$0xff]
    %v169 = vld [vmem:[#allocation2 + $0x3e8] sm:$0xff]
    %v170 = vld [vmem:[#allocation2 + $0x3f0] sm:$0xff]
    %v171 = vld [vmem:[#allocation2 + $0x3f8] sm:$0xff]
    %v172 = vld [vmem:[#allocation2 + $0x400] sm:$0xff]
    %v173 = vld [vmem:[#allocation2 + $0x408] sm:$0xff]
    %v174 = vld [vmem:[#allocation2 + $0x410] sm:$0xff]
    %v175 = vld [vmem:[#allocation2 + $0x418] sm:$0xff]
    %v176 = vld [vmem:[#allocation2 + $0x420] sm:$0xff]
    %v177 = vld [vmem:[#allocation2 + $0x428] sm:$0xff]
    %v178 = vld [vmem:[#allocation2 + $0x430] sm:$0xff]
    %v179 = vld [vmem:[#allocation2 + $0x438] sm:$0xff]
    %v180 = vld [vmem:[#allocation2 + $0x440] sm:$0xff]
    %v181 = vld [vmem:[#allocation2 + $0x448] sm:$0xff]
    %v182 = vld [vmem:[#allocation2 + $0x450] sm:$0xff]
    %v183 = vld [vmem:[#allocation2 + $0x458] sm:$0xff]
    %v184 = vld [vmem:[#allocation2 + $0x460] sm:$0xff]
    %v185 = vld [vmem:[#allocation2 + $0x468] sm:$0xff]
    %v186 = vld [vmem:[#allocation2 + $0x470] sm:$0xff]
    %v187 = vld [vmem:[#allocation2 + $0x478] sm:$0xff]
    %v188 = vld [vmem:[#allocation2 + $0x480] sm:$0xff]
    %v189 = vld [vmem:[#allocation2 + $0x488] sm:$0xff]
    %v190 = vld [vmem:[#allocation2 + $0x490] sm:$0xff]
    %v191 = vld [vmem:[#allocation2 + $0x498] sm:$0xff]
    %v192 = vld [vmem:[#allocation2 + $0x4a0] sm:$0xff]
    %v193 = vld [vmem:[#allocation2 + $0x4a8] sm:$0xff]
    %v194 = vld [vmem:[#allocation2 + $0x4b0] sm:$0xff]
    %v195 = vld [vmem:[#allocation2 + $0x4b8] sm:$0xff]
    %v196 = vld [vmem:[#allocation2 + $0x4c0] sm:$0xff]
    %v197 = vld [vmem:[#allocation2 + $0x4c8] sm:$0xff]
    %v198 = vld [vmem:[#allocation2 + $0x4d0] sm:$0xff]
    %v199 = vld [vmem:[#allocation2 + $0x4d8] sm:$0xff]
    %v200 = vld [vmem:[#allocation2 + $0x4e0] sm:$0xff]
    %v201 = vld [vmem:[#allocation2 + $0x4e8] sm:$0xff]
    %v202 = vld [vmem:[#allocation2 + $0x4f0] sm:$0xff]
    %v203 = vld [vmem:[#allocation2 + $0x4f8] sm:$0xff]
    %v204 = vld [vmem:[#allocation2 + $0x500] sm:$0xff]
    %v205 = vld [vmem:[#allocation2 + $0x508] sm:$0xff]
    %v206 = vld [vmem:[#allocation2 + $0x510] sm:$0xff]
    %v207 = vld [vmem:[#allocation2 + $0x518] sm:$0xff]
    %v208 = vld [vmem:[#allocation2 + $0x520] sm:$0xff]
    %v209 = vld [vmem:[#allocation2 + $0x528] sm:$0xff]
    %v210 = vld [vmem:[#allocation2 + $0x530] sm:$0xff]
    %v211 = vld [vmem:[#allocation2 + $0x538] sm:$0xff]
    %v212 = vld [vmem:[#allocation2 + $0x540] sm:$0xff]
    %v213 = vld [vmem:[#allocation2 + $0x548] sm:$0xff]
    %v214 = vld [vmem:[#allocation2 + $0x550] sm:$0xff]
    %v215 = vld [vmem:[#allocation2 + $0x558] sm:$0xff]
    %v216 = vld [vmem:[#allocation2 + $0x560] sm:$0xff]
    %v217 = vld [vmem:[#allocation2 + $0x568] sm:$0xff]
    %v218 = vld [vmem:[#allocation2 + $0x570] sm:$0xff]
    %v219 = vld [vmem:[#allocation2 + $0x578] sm:$0xff]
    %v220 = vld [vmem:[#allocation2 + $0x580] sm:$0xff]
    %v221 = vld [vmem:[#allocation2 + $0x588] sm:$0xff]
    %v222 = vld [vmem:[#allocation2 + $0x590] sm:$0xff]
    %v223 = vld [vmem:[#allocation2 + $0x598] sm:$0xff]
    %v224 = vld [vmem:[#allocation2 + $0x5a0] sm:$0xff]
    %v225 = vld [vmem:[#allocation2 + $0x5a8] sm:$0xff]
    %v226 = vld [vmem:[#allocation2 + $0x5b0] sm:$0xff]
    %v227 = vld [vmem:[#allocation2 + $0x5b8] sm:$0xff]
    %v228 = vld [vmem:[#allocation2 + $0x5c0] sm:$0xff]
    %v229 = vld [vmem:[#allocation2 + $0x5c8] sm:$0xff]
    %v230 = vld [vmem:[#allocation2 + $0x5d0] sm:$0xff]
    %v231 = vld [vmem:[#allocation2 + $0x5d8] sm:$0xff]
    %v232 = vld [vmem:[#allocation2 + $0x5e0] sm:$0xff]
    %v233 = vld [vmem:[#allocation2 + $0x5e8] sm:$0xff]
    %v234 = vld [vmem:[#allocation2 + $0x5f0] sm:$0xff]
    %v235 = vld [vmem:[#allocation2 + $0x5f8] sm:$0xff]
    %v236 = vld [vmem:[#allocation2 + $0x600] sm:$0xff]
    %v237 = vld [vmem:[#allocation2 + $0x608] sm:$0xff]
    %v238 = vld [vmem:[#allocation2 + $0x610] sm:$0xff]
    %v239 = vld [vmem:[#allocation2 + $0x618] sm:$0xff]
    %v240 = vld [vmem:[#allocation2 + $0x620] sm:$0xff]
    %v241 = vld [vmem:[#allocation2 + $0x628] sm:$0xff]
    %v242 = vld [vmem:[#allocation2 + $0x630] sm:$0xff]
    %v243 = vld [vmem:[#allocation2 + $0x638] sm:$0xff]
    %v244 = vld [vmem:[#allocation2 + $0x640] sm:$0xff]
    %v245 = vld [vmem:[#allocation2 + $0x648] sm:$0xff]
    %v246 = vld [vmem:[#allocation2 + $0x650] sm:$0xff]
    %v247 = vld [vmem:[#allocation2 + $0x658] sm:$0xff]
    %v248 = vld [vmem:[#allocation2 + $0x660] sm:$0xff]
    %v249 = vld [vmem:[#allocation2 + $0x668] sm:$0xff]
    %v250 = vld [vmem:[#allocation2 + $0x670] sm:$0xff]
    %v251 = vld [vmem:[#allocation2 + $0x678] sm:$0xff]
    %v252 = vld [vmem:[#allocation2 + $0x680] sm:$0xff]
    %v253 = vld [vmem:[#allocation2 + $0x688] sm:$0xff]
    %v254 = vld [vmem:[#allocation2 + $0x690] sm:$0xff]
    %v255 = vld [vmem:[#allocation2 + $0x698] sm:$0xff]
    %v256 = vld [vmem:[#allocation2 + $0x6a0] sm:$0xff]
    %v257 = vld [vmem:[#allocation2 + $0x6a8] sm:$0xff]
    %v258 = vld [vmem:[#allocation2 + $0x6b0] sm:$0xff]
    %v259 = vld [vmem:[#allocation2 + $0x6b8] sm:$0xff]
    %v260 = vld [vmem:[#allocation2 + $0x6c0] sm:$0xff]
    %v261 = vld [vmem:[#allocation2 + $0x6c8] sm:$0xff]
    %v262 = vld [vmem:[#allocation2 + $0x6d0] sm:$0xff]
    %v263 = vld [vmem:[#allocation2 + $0x6d8] sm:$0xff]
    %v264 = vld [vmem:[#allocation2 + $0x6e0] sm:$0xff]
    %v265 = vld [vmem:[#allocation2 + $0x6e8] sm:$0xff]
    %v266 = vld [vmem:[#allocation2 + $0x6f0] sm:$0xff]
    %v267 = vld [vmem:[#allocation2 + $0x6f8] sm:$0xff]
    %v268 = vld [vmem:[#allocation2 + $0x700] sm:$0xff]
    %v269 = vld [vmem:[#allocation2 + $0x708] sm:$0xff]
    %v270 = vld [vmem:[#allocation2 + $0x710] sm:$0xff]
    %v271 = vld [vmem:[#allocation2 + $0x718] sm:$0xff]
    %v272 = vld [vmem:[#allocation2 + $0x720] sm:$0xff]
    %v273 = vld [vmem:[#allocation2 + $0x728] sm:$0xff]
    %v274 = vld [vmem:[#allocation2 + $0x730] sm:$0xff]
    %v275 = vld [vmem:[#allocation2 + $0x738] sm:$0xff]
    %v276 = vld [vmem:[#allocation2 + $0x740] sm:$0xff]
    %v277 = vld [vmem:[#allocation2 + $0x748] sm:$0xff]
    %v278 = vld [vmem:[#allocation2 + $0x750] sm:$0xff]
    %v279 = vld [vmem:[#allocation2 + $0x758] sm:$0xff]
    %v280 = vld [vmem:[#allocation2 + $0x760] sm:$0xff]
    %v281 = vld [vmem:[#allocation2 + $0x768] sm:$0xff]
    %v282 = vld [vmem:[#allocation2 + $0x770] sm:$0xff]
    %v283 = vld [vmem:[#allocation2 + $0x778] sm:$0xff]
    %v284 = vld [vmem:[#allocation2 + $0x780] sm:$0xff]
    %v285 = vld [vmem:[#allocation2 + $0x788] sm:$0xff]
    %v286 = vld [vmem:[#allocation2 + $0x790] sm:$0xff]
    %v287 = vld [vmem:[#allocation2 + $0x798] sm:$0xff]
    %v288 = vld [vmem:[#allocation2 + $0x7a0] sm:$0xff]
    %v289 = vld [vmem:[#allocation2 + $0x7a8] sm:$0xff]
    %v290 = vld [vmem:[#allocation2 + $0x7b0] sm:$0xff]
    %v291 = vld [vmem:[#allocation2 + $0x7b8] sm:$0xff]
    %v292 = vld [vmem:[#allocation2 + $0x7c0] sm:$0xff]
    %v293 = vld [vmem:[#allocation2 + $0x7c8] sm:$0xff]
    %v294 = vld [vmem:[#allocation2 + $0x7d0] sm:$0xff]
    %v295 = vld [vmem:[#allocation2 + $0x7d8] sm:$0xff]
    %v296 = vld [vmem:[#allocation2 + $0x7e0] sm:$0xff]
    %v297 = vld [vmem:[#allocation2 + $0x7e8] sm:$0xff]
    %v298 = vld [vmem:[#allocation2 + $0x7f0] sm:$0xff]
    %v299 = vld [vmem:[#allocation2 + $0x7f8] sm:$0xff]
    %v556 = vunpack.c.l.b16 %v44
    %v557 = vunpack.c.h.b16 %v44
    %v558 = vunpack.c.l.b16 %v45
    %v559 = vunpack.c.h.b16 %v45
    %v560 = vunpack.c.l.b16 %v46
    %v561 = vunpack.c.h.b16 %v46
    %v562 = vunpack.c.l.b16 %v47
    %v563 = vunpack.c.h.b16 %v47
    %v564 = vunpack.c.l.b16 %v48
    %v565 = vunpack.c.h.b16 %v48
    %v566 = vunpack.c.l.b16 %v49
    %v567 = vunpack.c.h.b16 %v49
    %v568 = vunpack.c.l.b16 %v50
    %v569 = vunpack.c.h.b16 %v50
    %v570 = vunpack.c.l.b16 %v51
    %v571 = vunpack.c.h.b16 %v51
    %v572 = vunpack.c.l.b16 %v52
    %v573 = vunpack.c.h.b16 %v52
    %v574 = vunpack.c.l.b16 %v53
    %v575 = vunpack.c.h.b16 %v53
    %v576 = vunpack.c.l.b16 %v54
    %v577 = vunpack.c.h.b16 %v54
    %v578 = vunpack.c.l.b16 %v55
    %v579 = vunpack.c.h.b16 %v55
    %v580 = vunpack.c.l.b16 %v56
    %v581 = vunpack.c.h.b16 %v56
    %v582 = vunpack.c.l.b16 %v57
    %v583 = vunpack.c.h.b16 %v57
    %v584 = vunpack.c.l.b16 %v58
    %v585 = vunpack.c.h.b16 %v58
    %v586 = vunpack.c.l.b16 %v59
    %v587 = vunpack.c.h.b16 %v59
    %v588 = vunpack.c.l.b16 %v60
    %v589 = vunpack.c.h.b16 %v60
    %v590 = vunpack.c.l.b16 %v61
    %v591 = vunpack.c.h.b16 %v61
    %v592 = vunpack.c.l.b16 %v62
    %v593 = vunpack.c.h.b16 %v62
    %v594 = vunpack.c.l.b16 %v63
    %v595 = vunpack.c.h.b16 %v63
    %v596 = vunpack.c.l.b16 %v64
    %v597 = vunpack.c.h.b16 %v64
    %v598 = vunpack.c.l.b16 %v65
    %v599 = vunpack.c.h.b16 %v65
    %v600 = vunpack.c.l.b16 %v66
    %v601 = vunpack.c.h.b16 %v66
    %v602 = vunpack.c.l.b16 %v67
    %v603 = vunpack.c.h.b16 %v67
    %v604 = vunpack.c.l.b16 %v68
    %v605 = vunpack.c.h.b16 %v68
    %v606 = vunpack.c.l.b16 %v69
    %v607 = vunpack.c.h.b16 %v69
    %v608 = vunpack.c.l.b16 %v70
    %v609 = vunpack.c.h.b16 %v70
    %v610 = vunpack.c.l.b16 %v71
    %v611 = vunpack.c.h.b16 %v71
    %v612 = vunpack.c.l.b16 %v72
    %v613 = vunpack.c.h.b16 %v72
    %v614 = vunpack.c.l.b16 %v73
    %v615 = vunpack.c.h.b16 %v73
    %v616 = vunpack.c.l.b16 %v74
    %v617 = vunpack.c.h.b16 %v74
    %v618 = vunpack.c.l.b16 %v75
    %v619 = vunpack.c.h.b16 %v75
    %v620 = vunpack.c.l.b16 %v76
    %v621 = vunpack.c.h.b16 %v76
    %v622 = vunpack.c.l.b16 %v77
    %v623 = vunpack.c.h.b16 %v77
    %v624 = vunpack.c.l.b16 %v78
    %v625 = vunpack.c.h.b16 %v78
    %v626 = vunpack.c.l.b16 %v79
    %v627 = vunpack.c.h.b16 %v79
    %v628 = vunpack.c.l.b16 %v80
    %v629 = vunpack.c.h.b16 %v80
    %v630 = vunpack.c.l.b16 %v81
    %v631 = vunpack.c.h.b16 %v81
    %v632 = vunpack.c.l.b16 %v82
    %v633 = vunpack.c.h.b16 %v82
    %v634 = vunpack.c.l.b16 %v83
    %v635 = vunpack.c.h.b16 %v83
    %v636 = vunpack.c.l.b16 %v84
    %v637 = vunpack.c.h.b16 %v84
    %v638 = vunpack.c.l.b16 %v85
    %v639 = vunpack.c.h.b16 %v85
    %v640 = vunpack.c.l.b16 %v86
    %v641 = vunpack.c.h.b16 %v86
    %v642 = vunpack.c.l.b16 %v87
    %v643 = vunpack.c.h.b16 %v87
    %v644 = vunpack.c.l.b16 %v88
    %v645 = vunpack.c.h.b16 %v88
    %v646 = vunpack.c.l.b16 %v89
    %v647 = vunpack.c.h.b16 %v89
    %v648 = vunpack.c.l.b16 %v90
    %v649 = vunpack.c.h.b16 %v90
    %v650 = vunpack.c.l.b16 %v91
    %v651 = vunpack.c.h.b16 %v91
    %v652 = vunpack.c.l.b16 %v92
    %v653 = vunpack.c.h.b16 %v92
    %v654 = vunpack.c.l.b16 %v93
    %v655 = vunpack.c.h.b16 %v93
    %v656 = vunpack.c.l.b16 %v94
    %v657 = vunpack.c.h.b16 %v94
    %v658 = vunpack.c.l.b16 %v95
    %v659 = vunpack.c.h.b16 %v95
    %v660 = vunpack.c.l.b16 %v96
    %v661 = vunpack.c.h.b16 %v96
    %v662 = vunpack.c.l.b16 %v97
    %v663 = vunpack.c.h.b16 %v97
    %v664 = vunpack.c.l.b16 %v98
    %v665 = vunpack.c.h.b16 %v98
    %v666 = vunpack.c.l.b16 %v99
    %v667 = vunpack.c.h.b16 %v99
    %v668 = vunpack.c.l.b16 %v100
    %v669 = vunpack.c.h.b16 %v100
    %v670 = vunpack.c.l.b16 %v101
    %v671 = vunpack.c.h.b16 %v101
    %v672 = vunpack.c.l.b16 %v102
    %v673 = vunpack.c.h.b16 %v102
    %v674 = vunpack.c.l.b16 %v103
    %v675 = vunpack.c.h.b16 %v103
    %v676 = vunpack.c.l.b16 %v104
    %v677 = vunpack.c.h.b16 %v104
    %v678 = vunpack.c.l.b16 %v105
    %v679 = vunpack.c.h.b16 %v105
    %v680 = vunpack.c.l.b16 %v106
    %v681 = vunpack.c.h.b16 %v106
    %v682 = vunpack.c.l.b16 %v107
    %v683 = vunpack.c.h.b16 %v107
    %v684 = vunpack.c.l.b16 %v108
    %v685 = vunpack.c.h.b16 %v108
    %v686 = vunpack.c.l.b16 %v109
    %v687 = vunpack.c.h.b16 %v109
    %v688 = vunpack.c.l.b16 %v110
    %v689 = vunpack.c.h.b16 %v110
    %v690 = vunpack.c.l.b16 %v111
    %v691 = vunpack.c.h.b16 %v111
    %v692 = vunpack.c.l.b16 %v112
    %v693 = vunpack.c.h.b16 %v112
    %v694 = vunpack.c.l.b16 %v113
    %v695 = vunpack.c.h.b16 %v113
    %v696 = vunpack.c.l.b16 %v114
    %v697 = vunpack.c.h.b16 %v114
    %v698 = vunpack.c.l.b16 %v115
    %v699 = vunpack.c.h.b16 %v115
    %v700 = vunpack.c.l.b16 %v116
    %v701 = vunpack.c.h.b16 %v116
    %v702 = vunpack.c.l.b16 %v117
    %v703 = vunpack.c.h.b16 %v117
    %v704 = vunpack.c.l.b16 %v118
    %v705 = vunpack.c.h.b16 %v118
    %v706 = vunpack.c.l.b16 %v119
    %v707 = vunpack.c.h.b16 %v119
    %v708 = vunpack.c.l.b16 %v120
    %v709 = vunpack.c.h.b16 %v120
    %v710 = vunpack.c.l.b16 %v121
    %v711 = vunpack.c.h.b16 %v121
    %v712 = vunpack.c.l.b16 %v122
    %v713 = vunpack.c.h.b16 %v122
    %v714 = vunpack.c.l.b16 %v123
    %v715 = vunpack.c.h.b16 %v123
    %v716 = vunpack.c.l.b16 %v124
    %v717 = vunpack.c.h.b16 %v124
    %v718 = vunpack.c.l.b16 %v125
    %v719 = vunpack.c.h.b16 %v125
    %v720 = vunpack.c.l.b16 %v126
    %v721 = vunpack.c.h.b16 %v126
    %v722 = vunpack.c.l.b16 %v127
    %v723 = vunpack.c.h.b16 %v127
    %v724 = vunpack.c.l.b16 %v128
    %v725 = vunpack.c.h.b16 %v128
    %v726 = vunpack.c.l.b16 %v129
    %v727 = vunpack.c.h.b16 %v129
    %v728 = vunpack.c.l.b16 %v130
    %v729 = vunpack.c.h.b16 %v130
    %v730 = vunpack.c.l.b16 %v131
    %v731 = vunpack.c.h.b16 %v131
    %v732 = vunpack.c.l.b16 %v132
    %v733 = vunpack.c.h.b16 %v132
    %v734 = vunpack.c.l.b16 %v133
    %v735 = vunpack.c.h.b16 %v133
    %v736 = vunpack.c.l.b16 %v134
    %v737 = vunpack.c.h.b16 %v134
    %v738 = vunpack.c.l.b16 %v135
    %v739 = vunpack.c.h.b16 %v135
    %v740 = vunpack.c.l.b16 %v136
    %v741 = vunpack.c.h.b16 %v136
    %v742 = vunpack.c.l.b16 %v137
    %v743 = vunpack.c.h.b16 %v137
    %v744 = vunpack.c.l.b16 %v138
    %v745 = vunpack.c.h.b16 %v138
    %v746 = vunpack.c.l.b16 %v139
    %v747 = vunpack.c.h.b16 %v139
    %v748 = vunpack.c.l.b16 %v140
    %v749 = vunpack.c.h.b16 %v140
    %v750 = vunpack.c.l.b16 %v141
    %v751 = vunpack.c.h.b16 %v141
    %v752 = vunpack.c.l.b16 %v142
    %v753 = vunpack.c.h.b16 %v142
    %v754 = vunpack.c.l.b16 %v143
    %v755 = vunpack.c.h.b16 %v143
    %v756 = vunpack.c.l.b16 %v144
    %v757 = vunpack.c.h.b16 %v144
    %v758 = vunpack.c.l.b16 %v145
    %v759 = vunpack.c.h.b16 %v145
    %v760 = vunpack.c.l.b16 %v146
    %v761 = vunpack.c.h.b16 %v146
    %v762 = vunpack.c.l.b16 %v147
    %v763 = vunpack.c.h.b16 %v147
    %v764 = vunpack.c.l.b16 %v148
    %v765 = vunpack.c.h.b16 %v148
    %v766 = vunpack.c.l.b16 %v149
    %v767 = vunpack.c.h.b16 %v149
    %v768 = vunpack.c.l.b16 %v150
    %v769 = vunpack.c.h.b16 %v150
    %v770 = vunpack.c.l.b16 %v151
    %v771 = vunpack.c.h.b16 %v151
    %v772 = vunpack.c.l.b16 %v152
    %v773 = vunpack.c.h.b16 %v152
    %v774 = vunpack.c.l.b16 %v153
    %v775 = vunpack.c.h.b16 %v153
    %v776 = vunpack.c.l.b16 %v154
    %v777 = vunpack.c.h.b16 %v154
    %v778 = vunpack.c.l.b16 %v155
    %v779 = vunpack.c.h.b16 %v155
    %v780 = vunpack.c.l.b16 %v156
    %v781 = vunpack.c.h.b16 %v156
    %v782 = vunpack.c.l.b16 %v157
    %v783 = vunpack.c.h.b16 %v157
    %v784 = vunpack.c.l.b16 %v158
    %v785 = vunpack.c.h.b16 %v158
    %v786 = vunpack.c.l.b16 %v159
    %v787 = vunpack.c.h.b16 %v159
    %v788 = vunpack.c.l.b16 %v160
    %v789 = vunpack.c.h.b16 %v160
    %v790 = vunpack.c.l.b16 %v161
    %v791 = vunpack.c.h.b16 %v161
    %v792 = vunpack.c.l.b16 %v162
    %v793 = vunpack.c.h.b16 %v162
    %v794 = vunpack.c.l.b16 %v163
    %v795 = vunpack.c.h.b16 %v163
    %v796 = vunpack.c.l.b16 %v164
    %v797 = vunpack.c.h.b16 %v164
    %v798 = vunpack.c.l.b16 %v165
    %v799 = vunpack.c.h.b16 %v165
    %v800 = vunpack.c.l.b16 %v166
    %v801 = vunpack.c.h.b16 %v166
    %v802 = vunpack.c.l.b16 %v167
    %v803 = vunpack.c.h.b16 %v167
    %v804 = vunpack.c.l.b16 %v168
    %v805 = vunpack.c.h.b16 %v168
    %v806 = vunpack.c.l.b16 %v169
    %v807 = vunpack.c.h.b16 %v169
    %v808 = vunpack.c.l.b16 %v170
    %v809 = vunpack.c.h.b16 %v170
    %v810 = vunpack.c.l.b16 %v171
    %v811 = vunpack.c.h.b16 %v171
    %v812 = vunpack.c.l.b16 %v172
    %v813 = vunpack.c.h.b16 %v172
    %v814 = vunpack.c.l.b16 %v173
    %v815 = vunpack.c.h.b16 %v173
    %v816 = vunpack.c.l.b16 %v174
    %v817 = vunpack.c.h.b16 %v174
    %v818 = vunpack.c.l.b16 %v175
    %v819 = vunpack.c.h.b16 %v175
    %v820 = vunpack.c.l.b16 %v176
    %v821 = vunpack.c.h.b16 %v176
    %v822 = vunpack.c.l.b16 %v177
    %v823 = vunpack.c.h.b16 %v177
    %v824 = vunpack.c.l.b16 %v178
    %v825 = vunpack.c.h.b16 %v178
    %v826 = vunpack.c.l.b16 %v179
    %v827 = vunpack.c.h.b16 %v179
    %v828 = vunpack.c.l.b16 %v180
    %v829 = vunpack.c.h.b16 %v180
    %v830 = vunpack.c.l.b16 %v181
    %v831 = vunpack.c.h.b16 %v181
    %v832 = vunpack.c.l.b16 %v182
    %v833 = vunpack.c.h.b16 %v182
    %v834 = vunpack.c.l.b16 %v183
    %v835 = vunpack.c.h.b16 %v183
    %v836 = vunpack.c.l.b16 %v184
    %v837 = vunpack.c.h.b16 %v184
    %v838 = vunpack.c.l.b16 %v185
    %v839 = vunpack.c.h.b16 %v185
    %v840 = vunpack.c.l.b16 %v186
    %v841 = vunpack.c.h.b16 %v186
    %v842 = vunpack.c.l.b16 %v187
    %v843 = vunpack.c.h.b16 %v187
    %v844 = vunpack.c.l.b16 %v188
    %v845 = vunpack.c.h.b16 %v188
    %v846 = vunpack.c.l.b16 %v189
    %v847 = vunpack.c.h.b16 %v189
    %v848 = vunpack.c.l.b16 %v190
    %v849 = vunpack.c.h.b16 %v190
    %v850 = vunpack.c.l.b16 %v191
    %v851 = vunpack.c.h.b16 %v191
    %v852 = vunpack.c.l.b16 %v192
    %v853 = vunpack.c.h.b16 %v192
    %v854 = vunpack.c.l.b16 %v193
    %v855 = vunpack.c.h.b16 %v193
    %v856 = vunpack.c.l.b16 %v194
    %v857 = vunpack.c.h.b16 %v194
    %v858 = vunpack.c.l.b16 %v195
    %v859 = vunpack.c.h.b16 %v195
    %v860 = vunpack.c.l.b16 %v196
    %v861 = vunpack.c.h.b16 %v196
    %v862 = vunpack.c.l.b16 %v197
    %v863 = vunpack.c.h.b16 %v197
    %v864 = vunpack.c.l.b16 %v198
    %v865 = vunpack.c.h.b16 %v198
    %v866 = vunpack.c.l.b16 %v199
    %v867 = vunpack.c.h.b16 %v199
    %v868 = vunpack.c.l.b16 %v200
    %v869 = vunpack.c.h.b16 %v200
    %v870 = vunpack.c.l.b16 %v201
    %v871 = vunpack.c.h.b16 %v201
    %v872 = vunpack.c.l.b16 %v202
    %v873 = vunpack.c.h.b16 %v202
    %v874 = vunpack.c.l.b16 %v203
    %v875 = vunpack.c.h.b16 %v203
    %v876 = vunpack.c.l.b16 %v204
    %v877 = vunpack.c.h.b16 %v204
    %v878 = vunpack.c.l.b16 %v205
    %v879 = vunpack.c.h.b16 %v205
    %v880 = vunpack.c.l.b16 %v206
    %v881 = vunpack.c.h.b16 %v206
    %v882 = vunpack.c.l.b16 %v207
    %v883 = vunpack.c.h.b16 %v207
    %v884 = vunpack.c.l.b16 %v208
    %v885 = vunpack.c.h.b16 %v208
    %v886 = vunpack.c.l.b16 %v209
    %v887 = vunpack.c.h.b16 %v209
    %v888 = vunpack.c.l.b16 %v210
    %v889 = vunpack.c.h.b16 %v210
    %v890 = vunpack.c.l.b16 %v211
    %v891 = vunpack.c.h.b16 %v211
    %v892 = vunpack.c.l.b16 %v212
    %v893 = vunpack.c.h.b16 %v212
    %v894 = vunpack.c.l.b16 %v213
    %v895 = vunpack.c.h.b16 %v213
    %v896 = vunpack.c.l.b16 %v214
    %v897 = vunpack.c.h.b16 %v214
    %v898 = vunpack.c.l.b16 %v215
    %v899 = vunpack.c.h.b16 %v215
    %v900 = vunpack.c.l.b16 %v216
    %v901 = vunpack.c.h.b16 %v216
    %v902 = vunpack.c.l.b16 %v217
    %v903 = vunpack.c.h.b16 %v217
    %v904 = vunpack.c.l.b16 %v218
    %v905 = vunpack.c.h.b16 %v218
    %v906 = vunpack.c.l.b16 %v219
    %v907 = vunpack.c.h.b16 %v219
    %v908 = vunpack.c.l.b16 %v220
    %v909 = vunpack.c.h.b16 %v220
    %v910 = vunpack.c.l.b16 %v221
    %v911 = vunpack.c.h.b16 %v221
    %v912 = vunpack.c.l.b16 %v222
    %v913 = vunpack.c.h.b16 %v222
    %v914 = vunpack.c.l.b16 %v223
    %v915 = vunpack.c.h.b16 %v223
    %v916 = vunpack.c.l.b16 %v224
    %v917 = vunpack.c.h.b16 %v224
    %v918 = vunpack.c.l.b16 %v225
    %v919 = vunpack.c.h.b16 %v225
    %v920 = vunpack.c.l.b16 %v226
    %v921 = vunpack.c.h.b16 %v226
    %v922 = vunpack.c.l.b16 %v227
    %v923 = vunpack.c.h.b16 %v227
    %v924 = vunpack.c.l.b16 %v228
    %v925 = vunpack.c.h.b16 %v228
    %v926 = vunpack.c.l.b16 %v229
    %v927 = vunpack.c.h.b16 %v229
    %v928 = vunpack.c.l.b16 %v230
    %v929 = vunpack.c.h.b16 %v230
    %v930 = vunpack.c.l.b16 %v231
    %v931 = vunpack.c.h.b16 %v231
    %v932 = vunpack.c.l.b16 %v232
    %v933 = vunpack.c.h.b16 %v232
    %v934 = vunpack.c.l.b16 %v233
    %v935 = vunpack.c.h.b16 %v233
    %v936 = vunpack.c.l.b16 %v234
    %v937 = vunpack.c.h.b16 %v234
    %v938 = vunpack.c.l.b16 %v235
    %v939 = vunpack.c.h.b16 %v235
    %v940 = vunpack.c.l.b16 %v236
    %v941 = vunpack.c.h.b16 %v236
    %v942 = vunpack.c.l.b16 %v237
    %v943 = vunpack.c.h.b16 %v237
    %v944 = vunpack.c.l.b16 %v238
    %v945 = vunpack.c.h.b16 %v238
    %v946 = vunpack.c.l.b16 %v239
    %v947 = vunpack.c.h.b16 %v239
    %v948 = vunpack.c.l.b16 %v240
    %v949 = vunpack.c.h.b16 %v240
    %v950 = vunpack.c.l.b16 %v241
    %v951 = vunpack.c.h.b16 %v241
    %v952 = vunpack.c.l.b16 %v242
    %v953 = vunpack.c.h.b16 %v242
    %v954 = vunpack.c.l.b16 %v243
    %v955 = vunpack.c.h.b16 %v243
    %v956 = vunpack.c.l.b16 %v244
    %v957 = vunpack.c.h.b16 %v244
    %v958 = vunpack.c.l.b16 %v245
    %v959 = vunpack.c.h.b16 %v245
    %v960 = vunpack.c.l.b16 %v246
    %v961 = vunpack.c.h.b16 %v246
    %v962 = vunpack.c.l.b16 %v247
    %v963 = vunpack.c.h.b16 %v247
    %v964 = vunpack.c.l.b16 %v248
    %v965 = vunpack.c.h.b16 %v248
    %v966 = vunpack.c.l.b16 %v249
    %v967 = vunpack.c.h.b16 %v249
    %v968 = vunpack.c.l.b16 %v250
    %v969 = vunpack.c.h.b16 %v250
    %v970 = vunpack.c.l.b16 %v251
    %v971 = vunpack.c.h.b16 %v251
    %v972 = vunpack.c.l.b16 %v252
    %v973 = vunpack.c.h.b16 %v252
    %v974 = vunpack.c.l.b16 %v253
    %v975 = vunpack.c.h.b16 %v253
    %v976 = vunpack.c.l.b16 %v254
    %v977 = vunpack.c.h.b16 %v254
    %v978 = vunpack.c.l.b16 %v255
    %v979 = vunpack.c.h.b16 %v255
    %v980 = vunpack.c.l.b16 %v256
    %v981 = vunpack.c.h.b16 %v256
    %v982 = vunpack.c.l.b16 %v257
    %v983 = vunpack.c.h.b16 %v257
    %v984 = vunpack.c.l.b16 %v258
    %v985 = vunpack.c.h.b16 %v258
    %v986 = vunpack.c.l.b16 %v259
    %v987 = vunpack.c.h.b16 %v259
    %v988 = vunpack.c.l.b16 %v260
    %v989 = vunpack.c.h.b16 %v260
    %v990 = vunpack.c.l.b16 %v261
    %v991 = vunpack.c.h.b16 %v261
    %v992 = vunpack.c.l.b16 %v262
    %v993 = vunpack.c.h.b16 %v262
    %v994 = vunpack.c.l.b16 %v263
    %v995 = vunpack.c.h.b16 %v263
    %v996 = vunpack.c.l.b16 %v264
    %v997 = vunpack.c.h.b16 %v264
    %v998 = vunpack.c.l.b16 %v265
    %v999 = vunpack.c.h.b16 %v265
    %v1000 = vunpack.c.l.b16 %v266
    %v1001 = vunpack.c.h.b16 %v266
    %v1002 = vunpack.c.l.b16 %v267
    %v1003 = vunpack.c.h.b16 %v267
    %v1004 = vunpack.c.l.b16 %v268
    %v1005 = vunpack.c.h.b16 %v268
    %v1006 = vunpack.c.l.b16 %v269
    %v1007 = vunpack.c.h.b16 %v269
    %v1008 = vunpack.c.l.b16 %v270
    %v1009 = vunpack.c.h.b16 %v270
    %v1010 = vunpack.c.l.b16 %v271
    %v1011 = vunpack.c.h.b16 %v271
    %v1012 = vunpack.c.l.b16 %v272
    %v1013 = vunpack.c.h.b16 %v272
    %v1014 = vunpack.c.l.b16 %v273
    %v1015 = vunpack.c.h.b16 %v273
    %v1016 = vunpack.c.l.b16 %v274
    %v1017 = vunpack.c.h.b16 %v274
    %v1018 = vunpack.c.l.b16 %v275
    %v1019 = vunpack.c.h.b16 %v275
    %v1020 = vunpack.c.l.b16 %v276
    %v1021 = vunpack.c.h.b16 %v276
    %v1022 = vunpack.c.l.b16 %v277
    %v1023 = vunpack.c.h.b16 %v277
    %v1024 = vunpack.c.l.b16 %v278
    %v1025 = vunpack.c.h.b16 %v278
    %v1026 = vunpack.c.l.b16 %v279
    %v1027 = vunpack.c.h.b16 %v279
    %v1028 = vunpack.c.l.b16 %v280
    %v1029 = vunpack.c.h.b16 %v280
    %v1030 = vunpack.c.l.b16 %v281
    %v1031 = vunpack.c.h.b16 %v281
    %v1032 = vunpack.c.l.b16 %v282
    %v1033 = vunpack.c.h.b16 %v282
    %v1034 = vunpack.c.l.b16 %v283
    %v1035 = vunpack.c.h.b16 %v283
    %v1036 = vunpack.c.l.b16 %v284
    %v1037 = vunpack.c.h.b16 %v284
    %v1038 = vunpack.c.l.b16 %v285
    %v1039 = vunpack.c.h.b16 %v285
    %v1040 = vunpack.c.l.b16 %v286
    %v1041 = vunpack.c.h.b16 %v286
    %v1042 = vunpack.c.l.b16 %v287
    %v1043 = vunpack.c.h.b16 %v287
    %v1044 = vunpack.c.l.b16 %v288
    %v1045 = vunpack.c.h.b16 %v288
    %v1046 = vunpack.c.l.b16 %v289
    %v1047 = vunpack.c.h.b16 %v289
    %v1048 = vunpack.c.l.b16 %v290
    %v1049 = vunpack.c.h.b16 %v290
    %v1050 = vunpack.c.l.b16 %v291
    %v1051 = vunpack.c.h.b16 %v291
    %v1052 = vunpack.c.l.b16 %v292
    %v1053 = vunpack.c.h.b16 %v292
    %v1054 = vunpack.c.l.b16 %v293
    %v1055 = vunpack.c.h.b16 %v293
    %v1056 = vunpack.c.l.b16 %v294
    %v1057 = vunpack.c.h.b16 %v294
    %v1058 = vunpack.c.l.b16 %v295
    %v1059 = vunpack.c.h.b16 %v295
    %v1060 = vunpack.c.l.b16 %v296
    %v1061 = vunpack.c.h.b16 %v296
    %v1062 = vunpack.c.l.b16 %v297
    %v1063 = vunpack.c.h.b16 %v297
    %v1064 = vunpack.c.l.b16 %v298
    %v1065 = vunpack.c.h.b16 %v298
    %v1066 = vunpack.c.l.b16 %v299
    %v1067 = vunpack.c.h.b16 %v299
    %v1068 = vpack.c.b16 %v588, %v556
    %v1069 = vpack.c.b16 %v589, %v557
    %v1070 = vpack.c.b16 %v590, %v558
    %v1071 = vpack.c.b16 %v591, %v559
    %v1072 = vpack.c.b16 %v592, %v560
    %v1073 = vpack.c.b16 %v593, %v561
    %v1074 = vpack.c.b16 %v594, %v562
    %v1075 = vpack.c.b16 %v595, %v563
    %v1076 = vpack.c.b16 %v596, %v564
    %v1077 = vpack.c.b16 %v597, %v565
    %v1078 = vpack.c.b16 %v598, %v566
    %v1079 = vpack.c.b16 %v599, %v567
    %v1080 = vpack.c.b16 %v600, %v568
    %v1081 = vpack.c.b16 %v601, %v569
    %v1082 = vpack.c.b16 %v602, %v570
    %v1083 = vpack.c.b16 %v603, %v571
    %v1084 = vpack.c.b16 %v604, %v572
    %v1085 = vpack.c.b16 %v605, %v573
    %v1086 = vpack.c.b16 %v606, %v574
    %v1087 = vpack.c.b16 %v607, %v575
    %v1088 = vpack.c.b16 %v608, %v576
    %v1089 = vpack.c.b16 %v609, %v577
    %v1090 = vpack.c.b16 %v610, %v578
    %v1091 = vpack.c.b16 %v611, %v579
    %v1092 = vpack.c.b16 %v612, %v580
    %v1093 = vpack.c.b16 %v613, %v581
    %v1094 = vpack.c.b16 %v614, %v582
    %v1095 = vpack.c.b16 %v615, %v583
    %v1096 = vpack.c.b16 %v616, %v584
    %v1097 = vpack.c.b16 %v617, %v585
    %v1098 = vpack.c.b16 %v618, %v586
    %v1099 = vpack.c.b16 %v619, %v587
    %v1100 = vpack.c.b16 %v652, %v620
    %v1101 = vpack.c.b16 %v653, %v621
    %v1102 = vpack.c.b16 %v654, %v622
    %v1103 = vpack.c.b16 %v655, %v623
    %v1104 = vpack.c.b16 %v656, %v624
    %v1105 = vpack.c.b16 %v657, %v625
    %v1106 = vpack.c.b16 %v658, %v626
    %v1107 = vpack.c.b16 %v659, %v627
    %v1108 = vpack.c.b16 %v660, %v628
    %v1109 = vpack.c.b16 %v661, %v629
    %v1110 = vpack.c.b16 %v662, %v630
    %v1111 = vpack.c.b16 %v663, %v631
    %v1112 = vpack.c.b16 %v664, %v632
    %v1113 = vpack.c.b16 %v665, %v633
    %v1114 = vpack.c.b16 %v666, %v634
    %v1115 = vpack.c.b16 %v667, %v635
    %v1116 = vpack.c.b16 %v668, %v636
    %v1117 = vpack.c.b16 %v669, %v637
    %v1118 = vpack.c.b16 %v670, %v638
    %v1119 = vpack.c.b16 %v671, %v639
    %v1120 = vpack.c.b16 %v672, %v640
    %v1121 = vpack.c.b16 %v673, %v641
    %v1122 = vpack.c.b16 %v674, %v642
    %v1123 = vpack.c.b16 %v675, %v643
    %v1124 = vpack.c.b16 %v676, %v644
    %v1125 = vpack.c.b16 %v677, %v645
    %v1126 = vpack.c.b16 %v678, %v646
    %v1127 = vpack.c.b16 %v679, %v647
    %v1128 = vpack.c.b16 %v680, %v648
    %v1129 = vpack.c.b16 %v681, %v649
    %v1130 = vpack.c.b16 %v682, %v650
    %v1131 = vpack.c.b16 %v683, %v651
    %v1132 = vpack.c.b16 %v716, %v684
    %v1133 = vpack.c.b16 %v717, %v685
    %v1134 = vpack.c.b16 %v718, %v686
    %v1135 = vpack.c.b16 %v719, %v687
    %v1136 = vpack.c.b16 %v720, %v688
    %v1137 = vpack.c.b16 %v721, %v689
    %v1138 = vpack.c.b16 %v722, %v690
    %v1139 = vpack.c.b16 %v723, %v691
    %v1140 = vpack.c.b16 %v724, %v692
    %v1141 = vpack.c.b16 %v725, %v693
    %v1142 = vpack.c.b16 %v726, %v694
    %v1143 = vpack.c.b16 %v727, %v695
    %v1144 = vpack.c.b16 %v728, %v696
    %v1145 = vpack.c.b16 %v729, %v697
    %v1146 = vpack.c.b16 %v730, %v698
    %v1147 = vpack.c.b16 %v731, %v699
    %v1148 = vpack.c.b16 %v732, %v700
    %v1149 = vpack.c.b16 %v733, %v701
    %v1150 = vpack.c.b16 %v734, %v702
    %v1151 = vpack.c.b16 %v735, %v703
    %v1152 = vpack.c.b16 %v736, %v704
    %v1153 = vpack.c.b16 %v737, %v705
    %v1154 = vpack.c.b16 %v738, %v706
    %v1155 = vpack.c.b16 %v739, %v707
    %v1156 = vpack.c.b16 %v740, %v708
    %v1157 = vpack.c.b16 %v741, %v709
    %v1158 = vpack.c.b16 %v742, %v710
    %v1159 = vpack.c.b16 %v743, %v711
    %v1160 = vpack.c.b16 %v744, %v712
    %v1161 = vpack.c.b16 %v745, %v713
    %v1162 = vpack.c.b16 %v746, %v714
    %v1163 = vpack.c.b16 %v747, %v715
    %v1164 = vpack.c.b16 %v780, %v748
    %v1165 = vpack.c.b16 %v781, %v749
    %v1166 = vpack.c.b16 %v782, %v750
    %v1167 = vpack.c.b16 %v783, %v751
    %v1168 = vpack.c.b16 %v784, %v752
    %v1169 = vpack.c.b16 %v785, %v753
    %v1170 = vpack.c.b16 %v786, %v754
    %v1171 = vpack.c.b16 %v787, %v755
    %v1172 = vpack.c.b16 %v788, %v756
    %v1173 = vpack.c.b16 %v789, %v757
    %v1174 = vpack.c.b16 %v790, %v758
    %v1175 = vpack.c.b16 %v791, %v759
    %v1176 = vpack.c.b16 %v792, %v760
    %v1177 = vpack.c.b16 %v793, %v761
    %v1178 = vpack.c.b16 %v794, %v762
    %v1179 = vpack.c.b16 %v795, %v763
    %v1180 = vpack.c.b16 %v796, %v764
    %v1181 = vpack.c.b16 %v797, %v765
    %v1182 = vpack.c.b16 %v798, %v766
    %v1183 = vpack.c.b16 %v799, %v767
    %v1184 = vpack.c.b16 %v800, %v768
    %v1185 = vpack.c.b16 %v801, %v769
    %v1186 = vpack.c.b16 %v802, %v770
    %v1187 = vpack.c.b16 %v803, %v771
    %v1188 = vpack.c.b16 %v804, %v772
    %v1189 = vpack.c.b16 %v805, %v773
    %v1190 = vpack.c.b16 %v806, %v774
    %v1191 = vpack.c.b16 %v807, %v775
    %v1192 = vpack.c.b16 %v808, %v776
    %v1193 = vpack.c.b16 %v809, %v777
    %v1194 = vpack.c.b16 %v810, %v778
    %v1195 = vpack.c.b16 %v811, %v779
    %v1196 = vpack.c.b16 %v844, %v812
    %v1197 = vpack.c.b16 %v845, %v813
    %v1198 = vpack.c.b16 %v846, %v814
    %v1199 = vpack.c.b16 %v847, %v815
    %v1200 = vpack.c.b16 %v848, %v816
    %v1201 = vpack.c.b16 %v849, %v817
    %v1202 = vpack.c.b16 %v850, %v818
    %v1203 = vpack.c.b16 %v851, %v819
    %v1204 = vpack.c.b16 %v852, %v820
    %v1205 = vpack.c.b16 %v853, %v821
    %v1206 = vpack.c.b16 %v854, %v822
    %v1207 = vpack.c.b16 %v855, %v823
    %v1208 = vpack.c.b16 %v856, %v824
    %v1209 = vpack.c.b16 %v857, %v825
    %v1210 = vpack.c.b16 %v858, %v826
    %v1211 = vpack.c.b16 %v859, %v827
    %v1212 = vpack.c.b16 %v860, %v828
    %v1213 = vpack.c.b16 %v861, %v829
    %v1214 = vpack.c.b16 %v862, %v830
    %v1215 = vpack.c.b16 %v863, %v831
    %v1216 = vpack.c.b16 %v864, %v832
    %v1217 = vpack.c.b16 %v865, %v833
    %v1218 = vpack.c.b16 %v866, %v834
    %v1219 = vpack.c.b16 %v867, %v835
    %v1220 = vpack.c.b16 %v868, %v836
    %v1221 = vpack.c.b16 %v869, %v837
    %v1222 = vpack.c.b16 %v870, %v838
    %v1223 = vpack.c.b16 %v871, %v839
    %v1224 = vpack.c.b16 %v872, %v840
    %v1225 = vpack.c.b16 %v873, %v841
    %v1226 = vpack.c.b16 %v874, %v842
    %v1227 = vpack.c.b16 %v875, %v843
    %v1228 = vpack.c.b16 %v908, %v876
    %v1229 = vpack.c.b16 %v909, %v877
    %v1230 = vpack.c.b16 %v910, %v878
    %v1231 = vpack.c.b16 %v911, %v879
    %v1232 = vpack.c.b16 %v912, %v880
    %v1233 = vpack.c.b16 %v913, %v881
    %v1234 = vpack.c.b16 %v914, %v882
    %v1235 = vpack.c.b16 %v915, %v883
    %v1236 = vpack.c.b16 %v916, %v884
    %v1237 = vpack.c.b16 %v917, %v885
    %v1238 = vpack.c.b16 %v918, %v886
    %v1239 = vpack.c.b16 %v919, %v887
    %v1240 = vpack.c.b16 %v920, %v888
    %v1241 = vpack.c.b16 %v921, %v889
    %v1242 = vpack.c.b16 %v922, %v890
    %v1243 = vpack.c.b16 %v923, %v891
    %v1244 = vpack.c.b16 %v924, %v892
    %v1245 = vpack.c.b16 %v925, %v893
    %v1246 = vpack.c.b16 %v926, %v894
    %v1247 = vpack.c.b16 %v927, %v895
    %v1248 = vpack.c.b16 %v928, %v896
    %v1249 = vpack.c.b16 %v929, %v897
    %v1250 = vpack.c.b16 %v930, %v898
    %v1251 = vpack.c.b16 %v931, %v899
    %v1252 = vpack.c.b16 %v932, %v900
    %v1253 = vpack.c.b16 %v933, %v901
    %v1254 = vpack.c.b16 %v934, %v902
    %v1255 = vpack.c.b16 %v935, %v903
    %v1256 = vpack.c.b16 %v936, %v904
    %v1257 = vpack.c.b16 %v937, %v905
    %v1258 = vpack.c.b16 %v938, %v906
    %v1259 = vpack.c.b16 %v939, %v907
    %v1260 = vpack.c.b16 %v972, %v940
    %v1261 = vpack.c.b16 %v973, %v941
    %v1262 = vpack.c.b16 %v974, %v942
    %v1263 = vpack.c.b16 %v975, %v943
    %v1264 = vpack.c.b16 %v976, %v944
    %v1265 = vpack.c.b16 %v977, %v945
    %v1266 = vpack.c.b16 %v978, %v946
    %v1267 = vpack.c.b16 %v979, %v947
    %v1268 = vpack.c.b16 %v980, %v948
    %v1269 = vpack.c.b16 %v981, %v949
    %v1270 = vpack.c.b16 %v982, %v950
    %v1271 = vpack.c.b16 %v983, %v951
    %v1272 = vpack.c.b16 %v984, %v952
    %v1273 = vpack.c.b16 %v985, %v953
    %v1274 = vpack.c.b16 %v986, %v954
    %v1275 = vpack.c.b16 %v987, %v955
    %v1276 = vpack.c.b16 %v988, %v956
    %v1277 = vpack.c.b16 %v989, %v957
    %v1278 = vpack.c.b16 %v990, %v958
    %v1279 = vpack.c.b16 %v991, %v959
    %v1280 = vpack.c.b16 %v992, %v960
    %v1281 = vpack.c.b16 %v993, %v961
    %v1282 = vpack.c.b16 %v994, %v962
    %v1283 = vpack.c.b16 %v995, %v963
    %v1284 = vpack.c.b16 %v996, %v964
    %v1285 = vpack.c.b16 %v997, %v965
    %v1286 = vpack.c.b16 %v998, %v966
    %v1287 = vpack.c.b16 %v999, %v967
    %v1288 = vpack.c.b16 %v1000, %v968
    %v1289 = vpack.c.b16 %v1001, %v969
    %v1290 = vpack.c.b16 %v1002, %v970
    %v1291 = vpack.c.b16 %v1003, %v971
    %v1292 = vpack.c.b16 %v1036, %v1004
    %v1293 = vpack.c.b16 %v1037, %v1005
    %v1294 = vpack.c.b16 %v1038, %v1006
    %v1295 = vpack.c.b16 %v1039, %v1007
    %v1296 = vpack.c.b16 %v1040, %v1008
    %v1297 = vpack.c.b16 %v1041, %v1009
    %v1298 = vpack.c.b16 %v1042, %v1010
    %v1299 = vpack.c.b16 %v1043, %v1011
    %v1300 = vpack.c.b16 %v1044, %v1012
    %v1301 = vpack.c.b16 %v1045, %v1013
    %v1302 = vpack.c.b16 %v1046, %v1014
    %v1303 = vpack.c.b16 %v1047, %v1015
    %v1304 = vpack.c.b16 %v1048, %v1016
    %v1305 = vpack.c.b16 %v1049, %v1017
    %v1306 = vpack.c.b16 %v1050, %v1018
    %v1307 = vpack.c.b16 %v1051, %v1019
    %v1308 = vpack.c.b16 %v1052, %v1020
    %v1309 = vpack.c.b16 %v1053, %v1021
    %v1310 = vpack.c.b16 %v1054, %v1022
    %v1311 = vpack.c.b16 %v1055, %v1023
    %v1312 = vpack.c.b16 %v1056, %v1024
    %v1313 = vpack.c.b16 %v1057, %v1025
    %v1314 = vpack.c.b16 %v1058, %v1026
    %v1315 = vpack.c.b16 %v1059, %v1027
    %v1316 = vpack.c.b16 %v1060, %v1028
    %v1317 = vpack.c.b16 %v1061, %v1029
    %v1318 = vpack.c.b16 %v1062, %v1030
    %v1319 = vpack.c.b16 %v1063, %v1031
    %v1320 = vpack.c.b16 %v1064, %v1032
    %v1321 = vpack.c.b16 %v1065, %v1033
    %v1322 = vpack.c.b16 %v1066, %v1034
    %v1323 = vpack.c.b16 %v1067, %v1035
    %1580 = vmatprep.subr.bf16.mxu0 %v1069
    %1581 = vmatpush1.bf16.msra.mxu0 %v1068
    %1582 = vmatprep.subr.bf16.mxu0 %v1101
    %1583 = vmatpush1.bf16.msra.mxu0 %v1100
    %1584 = vmatprep.subr.bf16.mxu0 %v1133
    %1585 = vmatpush1.bf16.msra.mxu0 %v1132
    %1586 = vmatprep.subr.bf16.mxu0 %v1165
    %1587 = vmatpush1.bf16.msra.mxu0 %v1164
    %1588 = vmatprep.subr.bf16.mxu0 %v1197
    %1589 = vmatpush1.bf16.msra.mxu0 %v1196
    %1590 = vmatprep.subr.bf16.mxu0 %v1229
    %1591 = vmatpush1.bf16.msra.mxu0 %v1228
    %1592 = vmatprep.subr.bf16.mxu0 %v1261
    %1593 = vmatpush1.bf16.msra.mxu0 %v1260
    %1594 = vmatprep.subr.bf16.mxu0 %v1293
    %1595 = vmatpush1.bf16.msra.mxu0 %v1292
    %1596 = vmatprep.subr.bf16.mxu0 0
    %1597 = vmatpush1.bf16.msra.mxu0 0
    %1598 = vmatprep.subr.bf16.mxu0 0
    %1599 = vmatpush1.bf16.msra.mxu0 0
    %1600 = vmatprep.subr.bf16.mxu0 0
    %1601 = vmatpush1.bf16.msra.mxu0 0
    %1602 = vmatprep.subr.bf16.mxu0 0
    %1603 = vmatpush1.bf16.msra.mxu0 0
    %1604 = vmatprep.subr.bf16.mxu0 0
    %1605 = vmatpush1.bf16.msra.mxu0 0
    %1606 = vmatprep.subr.bf16.mxu0 0
    %1607 = vmatpush1.bf16.msra.mxu0 0
    %1608 = vmatprep.subr.bf16.mxu0 0
    %1609 = vmatpush1.bf16.msra.mxu0 0
    %1610 = vmatprep.subr.bf16.mxu0 0
    %1611 = vmatpush1.bf16.msra.mxu0 0
    %1612 = vmatprep.mubr.bf16.mxu0 0
    %1613 = vmatmul.mubr.bf16.gmra.mrb[0].mxu0 %v43
    %v1614 = vpop.f32.mrb[0].mxu0
    %v1615 = vadd.f32 0.0, %v1614
    %v1616 = vpop.f32.mrb[0].mxu0
    %v1617 = vadd.f32 0.0, %v1616
    %v1618 = vpop.f32.mrb[0].mxu0
    %v1619 = vadd.f32 0.0, %v1618
    %v1620 = vpop.f32.mrb[0].mxu0
    %v1621 = vadd.f32 0.0, %v1620
    %1622 = vdwg.mxu0
    %1623 = vmatprep.subr.bf16.mxu0 %v1071
    %1624 = vmatpush1.bf16.msra.mxu0 %v1070
    %1625 = vmatprep.subr.bf16.mxu0 %v1103
    %1626 = vmatpush1.bf16.msra.mxu0 %v1102
    %1627 = vmatprep.subr.bf16.mxu0 %v1135
    %1628 = vmatpush1.bf16.msra.mxu0 %v1134
    %1629 = vmatprep.subr.bf16.mxu0 %v1167
    %1630 = vmatpush1.bf16.msra.mxu0 %v1166
    %1631 = vmatprep.subr.bf16.mxu0 %v1199
    %1632 = vmatpush1.bf16.msra.mxu0 %v1198
    %1633 = vmatprep.subr.bf16.mxu0 %v1231
    %1634 = vmatpush1.bf16.msra.mxu0 %v1230
    %1635 = vmatprep.subr.bf16.mxu0 %v1263
    %1636 = vmatpush1.bf16.msra.mxu0 %v1262
    %1637 = vmatprep.subr.bf16.mxu0 %v1295
    %1638 = vmatpush1.bf16.msra.mxu0 %v1294
    %1639 = vmatprep.subr.bf16.mxu0 0
    %1640 = vmatpush1.bf16.msra.mxu0 0
    %1641 = vmatprep.subr.bf16.mxu0 0
    %1642 = vmatpush1.bf16.msra.mxu0 0
    %1643 = vmatprep.subr.bf16.mxu0 0
    %1644 = vmatpush1.bf16.msra.mxu0 0
    %1645 = vmatprep.subr.bf16.mxu0 0
    %1646 = vmatpush1.bf16.msra.mxu0 0
    %1647 = vmatprep.subr.bf16.mxu0 0
    %1648 = vmatpush1.bf16.msra.mxu0 0
    %1649 = vmatprep.subr.bf16.mxu0 0
    %1650 = vmatpush1.bf16.msra.mxu0 0
    %1651 = vmatprep.subr.bf16.mxu0 0
    %1652 = vmatpush1.bf16.msra.mxu0 0
    %1653 = vmatprep.subr.bf16.mxu0 0
    %1654 = vmatpush1.bf16.msra.mxu0 0
    %1655 = vmatprep.mubr.bf16.mxu0 0
    %1656 = vmatmul.mubr.bf16.gmra.mrb[0].mxu0 %v43
    %v1657 = vpop.f32.mrb[0].mxu0
    %v1658 = vadd.f32 0.0, %v1657
    %v1659 = vpop.f32.mrb[0].mxu0
    %v1660 = vadd.f32 0.0, %v1659
    %v1661 = vpop.f32.mrb[0].mxu0
    %v1662 = vadd.f32 0.0, %v1661
    %v1663 = vpop.f32.mrb[0].mxu0
    %v1664 = vadd.f32 0.0, %v1663
    %1665 = vdwg.mxu0
    %1666 = vmatprep.subr.bf16.mxu0 %v1073
    %1667 = vmatpush1.bf16.msra.mxu0 %v1072
    %1668 = vmatprep.subr.bf16.mxu0 %v1105
    %1669 = vmatpush1.bf16.msra.mxu0 %v1104
    %1670 = vmatprep.subr.bf16.mxu0 %v1137
    %1671 = vmatpush1.bf16.msra.mxu0 %v1136
    %1672 = vmatprep.subr.bf16.mxu0 %v1169
    %1673 = vmatpush1.bf16.msra.mxu0 %v1168
    %1674 = vmatprep.subr.bf16.mxu0 %v1201
    %1675 = vmatpush1.bf16.msra.mxu0 %v1200
    %1676 = vmatprep.subr.bf16.mxu0 %v1233
    %1677 = vmatpush1.bf16.msra.mxu0 %v1232
    %1678 = vmatprep.subr.bf16.mxu0 %v1265
    %1679 = vmatpush1.bf16.msra.mxu0 %v1264
    %1680 = vmatprep.subr.bf16.mxu0 %v1297
    %1681 = vmatpush1.bf16.msra.mxu0 %v1296
    %1682 = vmatprep.subr.bf16.mxu0 0
    %1683 = vmatpush1.bf16.msra.mxu0 0
    %1684 = vmatprep.subr.bf16.mxu0 0
    %1685 = vmatpush1.bf16.msra.mxu0 0
    %1686 = vmatprep.subr.bf16.mxu0 0
    %1687 = vmatpush1.bf16.msra.mxu0 0
    %1688 = vmatprep.subr.bf16.mxu0 0
    %1689 = vmatpush1.bf16.msra.mxu0 0
    %1690 = vmatprep.subr.bf16.mxu0 0
    %1691 = vmatpush1.bf16.msra.mxu0 0
    %1692 = vmatprep.subr.bf16.mxu0 0
    %1693 = vmatpush1.bf16.msra.mxu0 0
    %1694 = vmatprep.subr.bf16.mxu0 0
    %1695 = vmatpush1.bf16.msra.mxu0 0
    %1696 = vmatprep.subr.bf16.mxu0 0
    %1697 = vmatpush1.bf16.msra.mxu0 0
    %1698 = vmatprep.mubr.bf16.mxu0 0
    %1699 = vmatmul.mubr.bf16.gmra.mrb[0].mxu0 %v43
    %v1700 = vpop.f32.mrb[0].mxu0
    %v1701 = vadd.f32 0.0, %v1700
    %v1702 = vpop.f32.mrb[0].mxu0
    %v1703 = vadd.f32 0.0, %v1702
    %v1704 = vpop.f32.mrb[0].mxu0
    %v1705 = vadd.f32 0.0, %v1704
    %v1706 = vpop.f32.mrb[0].mxu0
    %v1707 = vadd.f32 0.0, %v1706
    %1708 = vdwg.mxu0
    %1709 = vmatprep.subr.bf16.mxu0 %v1075
    %1710 = vmatpush1.bf16.msra.mxu0 %v1074
    %1711 = vmatprep.subr.bf16.mxu0 %v1107
    %1712 = vmatpush1.bf16.msra.mxu0 %v1106
    %1713 = vmatprep.subr.bf16.mxu0 %v1139
    %1714 = vmatpush1.bf16.msra.mxu0 %v1138
    %1715 = vmatprep.subr.bf16.mxu0 %v1171
    %1716 = vmatpush1.bf16.msra.mxu0 %v1170
    %1717 = vmatprep.subr.bf16.mxu0 %v1203
    %1718 = vmatpush1.bf16.msra.mxu0 %v1202
    %1719 = vmatprep.subr.bf16.mxu0 %v1235
    %1720 = vmatpush1.bf16.msra.mxu0 %v1234
    %1721 = vmatprep.subr.bf16.mxu0 %v1267
    %1722 = vmatpush1.bf16.msra.mxu0 %v1266
    %1723 = vmatprep.subr.bf16.mxu0 %v1299
    %1724 = vmatpush1.bf16.msra.mxu0 %v1298
    %1725 = vmatprep.subr.bf16.mxu0 0
    %1726 = vmatpush1.bf16.msra.mxu0 0
    %1727 = vmatprep.subr.bf16.mxu0 0
    %1728 = vmatpush1.bf16.msra.mxu0 0
    %1729 = vmatprep.subr.bf16.mxu0 0
    %1730 = vmatpush1.bf16.msra.mxu0 0
    %1731 = vmatprep.subr.bf16.mxu0 0
    %1732 = vmatpush1.bf16.msra.mxu0 0
    %1733 = vmatprep.subr.bf16.mxu0 0
    %1734 = vmatpush1.bf16.msra.mxu0 0
    %1735 = vmatprep.subr.bf16.mxu0 0
    %1736 = vmatpush1.bf16.msra.mxu0 0
    %1737 = vmatprep.subr.bf16.mxu0 0
    %1738 = vmatpush1.bf16.msra.mxu0 0
    %1739 = vmatprep.subr.bf16.mxu0 0
    %1740 = vmatpush1.bf16.msra.mxu0 0
    %1741 = vmatprep.mubr.bf16.mxu0 0
    %1742 = vmatmul.mubr.bf16.gmra.mrb[0].mxu0 %v43
    %v1743 = vpop.f32.mrb[0].mxu0
    %v1744 = vadd.f32 0.0, %v1743
    %v1745 = vpop.f32.mrb[0].mxu0
    %v1746 = vadd.f32 0.0, %v1745
    %v1747 = vpop.f32.mrb[0].mxu0
    %v1748 = vadd.f32 0.0, %v1747
    %v1749 = vpop.f32.mrb[0].mxu0
    %v1750 = vadd.f32 0.0, %v1749
    %1751 = vdwg.mxu0
    %1752 = vmatprep.subr.bf16.mxu0 %v1077
    %1753 = vmatpush1.bf16.msra.mxu0 %v1076
    %1754 = vmatprep.subr.bf16.mxu0 %v1109
    %1755 = vmatpush1.bf16.msra.mxu0 %v1108
    %1756 = vmatprep.subr.bf16.mxu0 %v1141
    %1757 = vmatpush1.bf16.msra.mxu0 %v1140
    %1758 = vmatprep.subr.bf16.mxu0 %v1173
    %1759 = vmatpush1.bf16.msra.mxu0 %v1172
    %1760 = vmatprep.subr.bf16.mxu0 %v1205
    %1761 = vmatpush1.bf16.msra.mxu0 %v1204
    %1762 = vmatprep.subr.bf16.mxu0 %v1237
    %1763 = vmatpush1.bf16.msra.mxu0 %v1236
    %1764 = vmatprep.subr.bf16.mxu0 %v1269
    %1765 = vmatpush1.bf16.msra.mxu0 %v1268
    %1766 = vmatprep.subr.bf16.mxu0 %v1301
    %1767 = vmatpush1.bf16.msra.mxu0 %v1300
    %1768 = vmatprep.subr.bf16.mxu0 0
    %1769 = vmatpush1.bf16.msra.mxu0 0
    %1770 = vmatprep.subr.bf16.mxu0 0
    %1771 = vmatpush1.bf16.msra.mxu0 0
    %1772 = vmatprep.subr.bf16.mxu0 0
    %1773 = vmatpush1.bf16.msra.mxu0 0
    %1774 = vmatprep.subr.bf16.mxu0 0
    %1775 = vmatpush1.bf16.msra.mxu0 0
    %1776 = vmatprep.subr.bf16.mxu0 0
    %1777 = vmatpush1.bf16.msra.mxu0 0
    %1778 = vmatprep.subr.bf16.mxu0 0
    %1779 = vmatpush1.bf16.msra.mxu0 0
    %1780 = vmatprep.subr.bf16.mxu0 0
    %1781 = vmatpush1.bf16.msra.mxu0 0
    %1782 = vmatprep.subr.bf16.mxu0 0
    %1783 = vmatpush1.bf16.msra.mxu0 0
    %1784 = vmatprep.mubr.bf16.mxu0 0
    %1785 = vmatmul.mubr.bf16.gmra.mrb[0].mxu0 %v43
    %v1786 = vpop.f32.mrb[0].mxu0
    %v1787 = vadd.f32 0.0, %v1786
    %v1788 = vpop.f32.mrb[0].mxu0
    %v1789 = vadd.f32 0.0, %v1788
    %v1790 = vpop.f32.mrb[0].mxu0
    %v1791 = vadd.f32 0.0, %v1790
    %v1792 = vpop.f32.mrb[0].mxu0
    %v1793 = vadd.f32 0.0, %v1792
    %1794 = vdwg.mxu0
    %1795 = vmatprep.subr.bf16.mxu0 %v1079
    %1796 = vmatpush1.bf16.msra.mxu0 %v1078
    %1797 = vmatprep.subr.bf16.mxu0 %v1111
    %1798 = vmatpush1.bf16.msra.mxu0 %v1110
    %1799 = vmatprep.subr.bf16.mxu0 %v1143
    %1800 = vmatpush1.bf16.msra.mxu0 %v1142
    %1801 = vmatprep.subr.bf16.mxu0 %v1175
    %1802 = vmatpush1.bf16.msra.mxu0 %v1174
    %1803 = vmatprep.subr.bf16.mxu0 %v1207
    %1804 = vmatpush1.bf16.msra.mxu0 %v1206
    %1805 = vmatprep.subr.bf16.mxu0 %v1239
    %1806 = vmatpush1.bf16.msra.mxu0 %v1238
    %1807 = vmatprep.subr.bf16.mxu0 %v1271
    %1808 = vmatpush1.bf16.msra.mxu0 %v1270
    %1809 = vmatprep.subr.bf16.mxu0 %v1303
    %1810 = vmatpush1.bf16.msra.mxu0 %v1302
    %1811 = vmatprep.subr.bf16.mxu0 0
    %1812 = vmatpush1.bf16.msra.mxu0 0
    %1813 = vmatprep.subr.bf16.mxu0 0
    %1814 = vmatpush1.bf16.msra.mxu0 0
    %1815 = vmatprep.subr.bf16.mxu0 0
    %1816 = vmatpush1.bf16.msra.mxu0 0
    %1817 = vmatprep.subr.bf16.mxu0 0
    %1818 = vmatpush1.bf16.msra.mxu0 0
    %1819 = vmatprep.subr.bf16.mxu0 0
    %1820 = vmatpush1.bf16.msra.mxu0 0
    %1821 = vmatprep.subr.bf16.mxu0 0
    %1822 = vmatpush1.bf16.msra.mxu0 0
    %1823 = vmatprep.subr.bf16.mxu0 0
    %1824 = vmatpush1.bf16.msra.mxu0 0
    %1825 = vmatprep.subr.bf16.mxu0 0
    %1826 = vmatpush1.bf16.msra.mxu0 0
    %1827 = vmatprep.mubr.bf16.mxu0 0
    %1828 = vmatmul.mubr.bf16.gmra.mrb[0].mxu0 %v43
    %v1829 = vpop.f32.mrb[0].mxu0
    %v1830 = vadd.f32 0.0, %v1829
    %v1831 = vpop.f32.mrb[0].mxu0
    %v1832 = vadd.f32 0.0, %v1831
    %v1833 = vpop.f32.mrb[0].mxu0
    %v1834 = vadd.f32 0.0, %v1833
    %v1835 = vpop.f32.mrb[0].mxu0
    %v1836 = vadd.f32 0.0, %v1835
    %1837 = vdwg.mxu0
    %1838 = vmatprep.subr.bf16.mxu0 %v1081
    %1839 = vmatpush1.bf16.msra.mxu0 %v1080
    %1840 = vmatprep.subr.bf16.mxu0 %v1113
    %1841 = vmatpush1.bf16.msra.mxu0 %v1112
    %1842 = vmatprep.subr.bf16.mxu0 %v1145
    %1843 = vmatpush1.bf16.msra.mxu0 %v1144
    %1844 = vmatprep.subr.bf16.mxu0 %v1177
    %1845 = vmatpush1.bf16.msra.mxu0 %v1176
    %1846 = vmatprep.subr.bf16.mxu0 %v1209
    %1847 = vmatpush1.bf16.msra.mxu0 %v1208
    %1848 = vmatprep.subr.bf16.mxu0 %v1241
    %1849 = vmatpush1.bf16.msra.mxu0 %v1240
    %1850 = vmatprep.subr.bf16.mxu0 %v1273
    %1851 = vmatpush1.bf16.msra.mxu0 %v1272
    %1852 = vmatprep.subr.bf16.mxu0 %v1305
    %1853 = vmatpush1.bf16.msra.mxu0 %v1304
    %1854 = vmatprep.subr.bf16.mxu0 0
    %1855 = vmatpush1.bf16.msra.mxu0 0
    %1856 = vmatprep.subr.bf16.mxu0 0
    %1857 = vmatpush1.bf16.msra.mxu0 0
    %1858 = vmatprep.subr.bf16.mxu0 0
    %1859 = vmatpush1.bf16.msra.mxu0 0
    %1860 = vmatprep.subr.bf16.mxu0 0
    %1861 = vmatpush1.bf16.msra.mxu0 0
    %1862 = vmatprep.subr.bf16.mxu0 0
    %1863 = vmatpush1.bf16.msra.mxu0 0
    %1864 = vmatprep.subr.bf16.mxu0 0
    %1865 = vmatpush1.bf16.msra.mxu0 0
    %1866 = vmatprep.subr.bf16.mxu0 0
    %1867 = vmatpush1.bf16.msra.mxu0 0
    %1868 = vmatprep.subr.bf16.mxu0 0
    %1869 = vmatpush1.bf16.msra.mxu0 0
    %1870 = vmatprep.mubr.bf16.mxu0 0
    %1871 = vmatmul.mubr.bf16.gmra.mrb[0].mxu0 %v43
    %v1872 = vpop.f32.mrb[0].mxu0
    %v1873 = vadd.f32 0.0, %v1872
    %v1874 = vpop.f32.mrb[0].mxu0
    %v1875 = vadd.f32 0.0, %v1874
    %v1876 = vpop.f32.mrb[0].mxu0
    %v1877 = vadd.f32 0.0, %v1876
    %v1878 = vpop.f32.mrb[0].mxu0
    %v1879 = vadd.f32 0.0, %v1878
    %1880 = vdwg.mxu0
    %1881 = vmatprep.subr.bf16.mxu0 %v1083
    %1882 = vmatpush1.bf16.msra.mxu0 %v1082
    %1883 = vmatprep.subr.bf16.mxu0 %v1115
    %1884 = vmatpush1.bf16.msra.mxu0 %v1114
    %1885 = vmatprep.subr.bf16.mxu0 %v1147
    %1886 = vmatpush1.bf16.msra.mxu0 %v1146
    %1887 = vmatprep.subr.bf16.mxu0 %v1179
    %1888 = vmatpush1.bf16.msra.mxu0 %v1178
    %1889 = vmatprep.subr.bf16.mxu0 %v1211
    %1890 = vmatpush1.bf16.msra.mxu0 %v1210
    %1891 = vmatprep.subr.bf16.mxu0 %v1243
    %1892 = vmatpush1.bf16.msra.mxu0 %v1242
    %1893 = vmatprep.subr.bf16.mxu0 %v1275
    %1894 = vmatpush1.bf16.msra.mxu0 %v1274
    %1895 = vmatprep.subr.bf16.mxu0 %v1307
    %1896 = vmatpush1.bf16.msra.mxu0 %v1306
    %1897 = vmatprep.subr.bf16.mxu0 0
    %1898 = vmatpush1.bf16.msra.mxu0 0
    %1899 = vmatprep.subr.bf16.mxu0 0
    %1900 = vmatpush1.bf16.msra.mxu0 0
    %1901 = vmatprep.subr.bf16.mxu0 0
    %1902 = vmatpush1.bf16.msra.mxu0 0
    %1903 = vmatprep.subr.bf16.mxu0 0
    %1904 = vmatpush1.bf16.msra.mxu0 0
    %1905 = vmatprep.subr.bf16.mxu0 0
    %1906 = vmatpush1.bf16.msra.mxu0 0
    %1907 = vmatprep.subr.bf16.mxu0 0
    %1908 = vmatpush1.bf16.msra.mxu0 0
    %1909 = vmatprep.subr.bf16.mxu0 0
    %1910 = vmatpush1.bf16.msra.mxu0 0
    %1911 = vmatprep.subr.bf16.mxu0 0
    %1912 = vmatpush1.bf16.msra.mxu0 0
    %1913 = vmatprep.mubr.bf16.mxu0 0
    %1914 = vmatmul.mubr.bf16.gmra.mrb[0].mxu0 %v43
    %v1915 = vpop.f32.mrb[0].mxu0
    %v1916 = vadd.f32 0.0, %v1915
    %v1917 = vpop.f32.mrb[0].mxu0
    %v1918 = vadd.f32 0.0, %v1917
    %v1919 = vpop.f32.mrb[0].mxu0
    %v1920 = vadd.f32 0.0, %v1919
    %v1921 = vpop.f32.mrb[0].mxu0
    %v1922 = vadd.f32 0.0, %v1921
    %1923 = vdwg.mxu0
    %1924 = vmatprep.subr.bf16.mxu0 %v1085
    %1925 = vmatpush1.bf16.msra.mxu0 %v1084
    %1926 = vmatprep.subr.bf16.mxu0 %v1117
    %1927 = vmatpush1.bf16.msra.mxu0 %v1116
    %1928 = vmatprep.subr.bf16.mxu0 %v1149
    %1929 = vmatpush1.bf16.msra.mxu0 %v1148
    %1930 = vmatprep.subr.bf16.mxu0 %v1181
    %1931 = vmatpush1.bf16.msra.mxu0 %v1180
    %1932 = vmatprep.subr.bf16.mxu0 %v1213
    %1933 = vmatpush1.bf16.msra.mxu0 %v1212
    %1934 = vmatprep.subr.bf16.mxu0 %v1245
    %1935 = vmatpush1.bf16.msra.mxu0 %v1244
    %1936 = vmatprep.subr.bf16.mxu0 %v1277
    %1937 = vmatpush1.bf16.msra.mxu0 %v1276
    %1938 = vmatprep.subr.bf16.mxu0 %v1309
    %1939 = vmatpush1.bf16.msra.mxu0 %v1308
    %1940 = vmatprep.subr.bf16.mxu0 0
    %1941 = vmatpush1.bf16.msra.mxu0 0
    %1942 = vmatprep.subr.bf16.mxu0 0
    %1943 = vmatpush1.bf16.msra.mxu0 0
    %1944 = vmatprep.subr.bf16.mxu0 0
    %1945 = vmatpush1.bf16.msra.mxu0 0
    %1946 = vmatprep.subr.bf16.mxu0 0
    %1947 = vmatpush1.bf16.msra.mxu0 0
    %1948 = vmatprep.subr.bf16.mxu0 0
    %1949 = vmatpush1.bf16.msra.mxu0 0
    %1950 = vmatprep.subr.bf16.mxu0 0
    %1951 = vmatpush1.bf16.msra.mxu0 0
    %1952 = vmatprep.subr.bf16.mxu0 0
    %1953 = vmatpush1.bf16.msra.mxu0 0
    %1954 = vmatprep.subr.bf16.mxu0 0
    %1955 = vmatpush1.bf16.msra.mxu0 0
    %1956 = vmatprep.mubr.bf16.mxu0 0
    %1957 = vmatmul.mubr.bf16.gmra.mrb[0].mxu0 %v43
    %v1958 = vpop.f32.mrb[0].mxu0
    %v1959 = vadd.f32 0.0, %v1958
    %v1960 = vpop.f32.mrb[0].mxu0
    %v1961 = vadd.f32 0.0, %v1960
    %v1962 = vpop.f32.mrb[0].mxu0
    %v1963 = vadd.f32 0.0, %v1962
    %v1964 = vpop.f32.mrb[0].mxu0
    %v1965 = vadd.f32 0.0, %v1964
    %1966 = vdwg.mxu0
    %1967 = vmatprep.subr.bf16.mxu0 %v1087
    %1968 = vmatpush1.bf16.msra.mxu0 %v1086
    %1969 = vmatprep.subr.bf16.mxu0 %v1119
    %1970 = vmatpush1.bf16.msra.mxu0 %v1118
    %1971 = vmatprep.subr.bf16.mxu0 %v1151
    %1972 = vmatpush1.bf16.msra.mxu0 %v1150
    %1973 = vmatprep.subr.bf16.mxu0 %v1183
    %1974 = vmatpush1.bf16.msra.mxu0 %v1182
    %1975 = vmatprep.subr.bf16.mxu0 %v1215
    %1976 = vmatpush1.bf16.msra.mxu0 %v1214
    %1977 = vmatprep.subr.bf16.mxu0 %v1247
    %1978 = vmatpush1.bf16.msra.mxu0 %v1246
    %1979 = vmatprep.subr.bf16.mxu0 %v1279
    %1980 = vmatpush1.bf16.msra.mxu0 %v1278
    %1981 = vmatprep.subr.bf16.mxu0 %v1311
    %1982 = vmatpush1.bf16.msra.mxu0 %v1310
    %1983 = vmatprep.subr.bf16.mxu0 0
    %1984 = vmatpush1.bf16.msra.mxu0 0
    %1985 = vmatprep.subr.bf16.mxu0 0
    %1986 = vmatpush1.bf16.msra.mxu0 0
    %1987 = vmatprep.subr.bf16.mxu0 0
    %1988 = vmatpush1.bf16.msra.mxu0 0
    %1989 = vmatprep.subr.bf16.mxu0 0
    %1990 = vmatpush1.bf16.msra.mxu0 0
    %1991 = vmatprep.subr.bf16.mxu0 0
    %1992 = vmatpush1.bf16.msra.mxu0 0
    %1993 = vmatprep.subr.bf16.mxu0 0
    %1994 = vmatpush1.bf16.msra.mxu0 0
    %1995 = vmatprep.subr.bf16.mxu0 0
    %1996 = vmatpush1.bf16.msra.mxu0 0
    %1997 = vmatprep.subr.bf16.mxu0 0
    %1998 = vmatpush1.bf16.msra.mxu0 0
    %1999 = vmatprep.mubr.bf16.mxu0 0
    %2000 = vmatmul.mubr.bf16.gmra.mrb[0].mxu0 %v43
    %v2001 = vpop.f32.mrb[0].mxu0
    %v2002 = vadd.f32 0.0, %v2001
    %v2003 = vpop.f32.mrb[0].mxu0
    %v2004 = vadd.f32 0.0, %v2003
    %v2005 = vpop.f32.mrb[0].mxu0
    %v2006 = vadd.f32 0.0, %v2005
    %v2007 = vpop.f32.mrb[0].mxu0
    %v2008 = vadd.f32 0.0, %v2007
    %2009 = vdwg.mxu0
    %2010 = vmatprep.subr.bf16.mxu0 %v1089
    %2011 = vmatpush1.bf16.msra.mxu0 %v1088
    %2012 = vmatprep.subr.bf16.mxu0 %v1121
    %2013 = vmatpush1.bf16.msra.mxu0 %v1120
    %2014 = vmatprep.subr.bf16.mxu0 %v1153
    %2015 = vmatpush1.bf16.msra.mxu0 %v1152
    %2016 = vmatprep.subr.bf16.mxu0 %v1185
    %2017 = vmatpush1.bf16.msra.mxu0 %v1184
    %2018 = vmatprep.subr.bf16.mxu0 %v1217
    %2019 = vmatpush1.bf16.msra.mxu0 %v1216
    %2020 = vmatprep.subr.bf16.mxu0 %v1249
    %2021 = vmatpush1.bf16.msra.mxu0 %v1248
    %2022 = vmatprep.subr.bf16.mxu0 %v1281
    %2023 = vmatpush1.bf16.msra.mxu0 %v1280
    %2024 = vmatprep.subr.bf16.mxu0 %v1313
    %2025 = vmatpush1.bf16.msra.mxu0 %v1312
    %2026 = vmatprep.subr.bf16.mxu0 0
    %2027 = vmatpush1.bf16.msra.mxu0 0
    %2028 = vmatprep.subr.bf16.mxu0 0
    %2029 = vmatpush1.bf16.msra.mxu0 0
    %2030 = vmatprep.subr.bf16.mxu0 0
    %2031 = vmatpush1.bf16.msra.mxu0 0
    %2032 = vmatprep.subr.bf16.mxu0 0
    %2033 = vmatpush1.bf16.msra.mxu0 0
    %2034 = vmatprep.subr.bf16.mxu0 0
    %2035 = vmatpush1.bf16.msra.mxu0 0
    %2036 = vmatprep.subr.bf16.mxu0 0
    %2037 = vmatpush1.bf16.msra.mxu0 0
    %2038 = vmatprep.subr.bf16.mxu0 0
    %2039 = vmatpush1.bf16.msra.mxu0 0
    %2040 = vmatprep.subr.bf16.mxu0 0
    %2041 = vmatpush1.bf16.msra.mxu0 0
    %2042 = vmatprep.mubr.bf16.mxu0 0
    %2043 = vmatmul.mubr.bf16.gmra.mrb[0].mxu0 %v43
    %v2044 = vpop.f32.mrb[0].mxu0
    %v2045 = vadd.f32 0.0, %v2044
    %v2046 = vpop.f32.mrb[0].mxu0
    %v2047 = vadd.f32 0.0, %v2046
    %v2048 = vpop.f32.mrb[0].mxu0
    %v2049 = vadd.f32 0.0, %v2048
    %v2050 = vpop.f32.mrb[0].mxu0
    %v2051 = vadd.f32 0.0, %v2050
    %2052 = vdwg.mxu0
    %2053 = vmatprep.subr.bf16.mxu0 %v1091
    %2054 = vmatpush1.bf16.msra.mxu0 %v1090
    %2055 = vmatprep.subr.bf16.mxu0 %v1123
    %2056 = vmatpush1.bf16.msra.mxu0 %v1122
    %2057 = vmatprep.subr.bf16.mxu0 %v1155
    %2058 = vmatpush1.bf16.msra.mxu0 %v1154
    %2059 = vmatprep.subr.bf16.mxu0 %v1187
    %2060 = vmatpush1.bf16.msra.mxu0 %v1186
    %2061 = vmatprep.subr.bf16.mxu0 %v1219
    %2062 = vmatpush1.bf16.msra.mxu0 %v1218
    %2063 = vmatprep.subr.bf16.mxu0 %v1251
    %2064 = vmatpush1.bf16.msra.mxu0 %v1250
    %2065 = vmatprep.subr.bf16.mxu0 %v1283
    %2066 = vmatpush1.bf16.msra.mxu0 %v1282
    %2067 = vmatprep.subr.bf16.mxu0 %v1315
    %2068 = vmatpush1.bf16.msra.mxu0 %v1314
    %2069 = vmatprep.subr.bf16.mxu0 0
    %2070 = vmatpush1.bf16.msra.mxu0 0
    %2071 = vmatprep.subr.bf16.mxu0 0
    %2072 = vmatpush1.bf16.msra.mxu0 0
    %2073 = vmatprep.subr.bf16.mxu0 0
    %2074 = vmatpush1.bf16.msra.mxu0 0
    %2075 = vmatprep.subr.bf16.mxu0 0
    %2076 = vmatpush1.bf16.msra.mxu0 0
    %2077 = vmatprep.subr.bf16.mxu0 0
    %2078 = vmatpush1.bf16.msra.mxu0 0
    %2079 = vmatprep.subr.bf16.mxu0 0
    %2080 = vmatpush1.bf16.msra.mxu0 0
    %2081 = vmatprep.subr.bf16.mxu0 0
    %2082 = vmatpush1.bf16.msra.mxu0 0
    %2083 = vmatprep.subr.bf16.mxu0 0
    %2084 = vmatpush1.bf16.msra.mxu0 0
    %2085 = vmatprep.mubr.bf16.mxu0 0
    %2086 = vmatmul.mubr.bf16.gmra.mrb[0].mxu0 %v43
    %v2087 = vpop.f32.mrb[0].mxu0
    %v2088 = vadd.f32 0.0, %v2087
    %v2089 = vpop.f32.mrb[0].mxu0
    %v2090 = vadd.f32 0.0, %v2089
    %v2091 = vpop.f32.mrb[0].mxu0
    %v2092 = vadd.f32 0.0, %v2091
    %v2093 = vpop.f32.mrb[0].mxu0
    %v2094 = vadd.f32 0.0, %v2093
    %2095 = vdwg.mxu0
    %2096 = vmatprep.subr.bf16.mxu0 %v1093
    %2097 = vmatpush1.bf16.msra.mxu0 %v1092
    %2098 = vmatprep.subr.bf16.mxu0 %v1125
    %2099 = vmatpush1.bf16.msra.mxu0 %v1124
    %2100 = vmatprep.subr.bf16.mxu0 %v1157
    %2101 = vmatpush1.bf16.msra.mxu0 %v1156
    %2102 = vmatprep.subr.bf16.mxu0 %v1189
    %2103 = vmatpush1.bf16.msra.mxu0 %v1188
    %2104 = vmatprep.subr.bf16.mxu0 %v1221
    %2105 = vmatpush1.bf16.msra.mxu0 %v1220
    %2106 = vmatprep.subr.bf16.mxu0 %v1253
    %2107 = vmatpush1.bf16.msra.mxu0 %v1252
    %2108 = vmatprep.subr.bf16.mxu0 %v1285
    %2109 = vmatpush1.bf16.msra.mxu0 %v1284
    %2110 = vmatprep.subr.bf16.mxu0 %v1317
    %2111 = vmatpush1.bf16.msra.mxu0 %v1316
    %2112 = vmatprep.subr.bf16.mxu0 0
    %2113 = vmatpush1.bf16.msra.mxu0 0
    %2114 = vmatprep.subr.bf16.mxu0 0
    %2115 = vmatpush1.bf16.msra.mxu0 0
    %2116 = vmatprep.subr.bf16.mxu0 0
    %2117 = vmatpush1.bf16.msra.mxu0 0
    %2118 = vmatprep.subr.bf16.mxu0 0
    %2119 = vmatpush1.bf16.msra.mxu0 0
    %2120 = vmatprep.subr.bf16.mxu0 0
    %2121 = vmatpush1.bf16.msra.mxu0 0
    %2122 = vmatprep.subr.bf16.mxu0 0
    %2123 = vmatpush1.bf16.msra.mxu0 0
    %2124 = vmatprep.subr.bf16.mxu0 0
    %2125 = vmatpush1.bf16.msra.mxu0 0
    %2126 = vmatprep.subr.bf16.mxu0 0
    %2127 = vmatpush1.bf16.msra.mxu0 0
    %2128 = vmatprep.mubr.bf16.mxu0 0
    %2129 = vmatmul.mubr.bf16.gmra.mrb[0].mxu0 %v43
    %v2130 = vpop.f32.mrb[0].mxu0
    %v2131 = vadd.f32 0.0, %v2130
    %v2132 = vpop.f32.mrb[0].mxu0
    %v2133 = vadd.f32 0.0, %v2132
    %v2134 = vpop.f32.mrb[0].mxu0
    %v2135 = vadd.f32 0.0, %v2134
    %v2136 = vpop.f32.mrb[0].mxu0
    %v2137 = vadd.f32 0.0, %v2136
    %2138 = vdwg.mxu0
    %2139 = vmatprep.subr.bf16.mxu0 %v1095
    %2140 = vmatpush1.bf16.msra.mxu0 %v1094
    %2141 = vmatprep.subr.bf16.mxu0 %v1127
    %2142 = vmatpush1.bf16.msra.mxu0 %v1126
    %2143 = vmatprep.subr.bf16.mxu0 %v1159
    %2144 = vmatpush1.bf16.msra.mxu0 %v1158
    %2145 = vmatprep.subr.bf16.mxu0 %v1191
    %2146 = vmatpush1.bf16.msra.mxu0 %v1190
    %2147 = vmatprep.subr.bf16.mxu0 %v1223
    %2148 = vmatpush1.bf16.msra.mxu0 %v1222
    %2149 = vmatprep.subr.bf16.mxu0 %v1255
    %2150 = vmatpush1.bf16.msra.mxu0 %v1254
    %2151 = vmatprep.subr.bf16.mxu0 %v1287
    %2152 = vmatpush1.bf16.msra.mxu0 %v1286
    %2153 = vmatprep.subr.bf16.mxu0 %v1319
    %2154 = vmatpush1.bf16.msra.mxu0 %v1318
    %2155 = vmatprep.subr.bf16.mxu0 0
    %2156 = vmatpush1.bf16.msra.mxu0 0
    %2157 = vmatprep.subr.bf16.mxu0 0
    %2158 = vmatpush1.bf16.msra.mxu0 0
    %2159 = vmatprep.subr.bf16.mxu0 0
    %2160 = vmatpush1.bf16.msra.mxu0 0
    %2161 = vmatprep.subr.bf16.mxu0 0
    %2162 = vmatpush1.bf16.msra.mxu0 0
    %2163 = vmatprep.subr.bf16.mxu0 0
    %2164 = vmatpush1.bf16.msra.mxu0 0
    %2165 = vmatprep.subr.bf16.mxu0 0
    %2166 = vmatpush1.bf16.msra.mxu0 0
    %2167 = vmatprep.subr.bf16.mxu0 0
    %2168 = vmatpush1.bf16.msra.mxu0 0
    %2169 = vmatprep.subr.bf16.mxu0 0
    %2170 = vmatpush1.bf16.msra.mxu0 0
    %2171 = vmatprep.mubr.bf16.mxu0 0
    %2172 = vmatmul.mubr.bf16.gmra.mrb[0].mxu0 %v43
    %v2173 = vpop.f32.mrb[0].mxu0
    %v2174 = vadd.f32 0.0, %v2173
    %v2175 = vpop.f32.mrb[0].mxu0
    %v2176 = vadd.f32 0.0, %v2175
    %v2177 = vpop.f32.mrb[0].mxu0
    %v2178 = vadd.f32 0.0, %v2177
    %v2179 = vpop.f32.mrb[0].mxu0
    %v2180 = vadd.f32 0.0, %v2179
    %2181 = vdwg.mxu0
    %2182 = vmatprep.subr.bf16.mxu0 %v1097
    %2183 = vmatpush1.bf16.msra.mxu0 %v1096
    %2184 = vmatprep.subr.bf16.mxu0 %v1129
    %2185 = vmatpush1.bf16.msra.mxu0 %v1128
    %2186 = vmatprep.subr.bf16.mxu0 %v1161
    %2187 = vmatpush1.bf16.msra.mxu0 %v1160
    %2188 = vmatprep.subr.bf16.mxu0 %v1193
    %2189 = vmatpush1.bf16.msra.mxu0 %v1192
    %2190 = vmatprep.subr.bf16.mxu0 %v1225
    %2191 = vmatpush1.bf16.msra.mxu0 %v1224
    %2192 = vmatprep.subr.bf16.mxu0 %v1257
    %2193 = vmatpush1.bf16.msra.mxu0 %v1256
    %2194 = vmatprep.subr.bf16.mxu0 %v1289
    %2195 = vmatpush1.bf16.msra.mxu0 %v1288
    %2196 = vmatprep.subr.bf16.mxu0 %v1321
    %2197 = vmatpush1.bf16.msra.mxu0 %v1320
    %2198 = vmatprep.subr.bf16.mxu0 0
    %2199 = vmatpush1.bf16.msra.mxu0 0
    %2200 = vmatprep.subr.bf16.mxu0 0
    %2201 = vmatpush1.bf16.msra.mxu0 0
    %2202 = vmatprep.subr.bf16.mxu0 0
    %2203 = vmatpush1.bf16.msra.mxu0 0
    %2204 = vmatprep.subr.bf16.mxu0 0
    %2205 = vmatpush1.bf16.msra.mxu0 0
    %2206 = vmatprep.subr.bf16.mxu0 0
    %2207 = vmatpush1.bf16.msra.mxu0 0
    %2208 = vmatprep.subr.bf16.mxu0 0
    %2209 = vmatpush1.bf16.msra.mxu0 0
    %2210 = vmatprep.subr.bf16.mxu0 0
    %2211 = vmatpush1.bf16.msra.mxu0 0
    %2212 = vmatprep.subr.bf16.mxu0 0
    %2213 = vmatpush1.bf16.msra.mxu0 0
    %2214 = vmatprep.mubr.bf16.mxu0 0
    %2215 = vmatmul.mubr.bf16.gmra.mrb[0].mxu0 %v43
    %v2216 = vpop.f32.mrb[0].mxu0
    %v2217 = vadd.f32 0.0, %v2216
    %v2218 = vpop.f32.mrb[0].mxu0
    %v2219 = vadd.f32 0.0, %v2218
    %v2220 = vpop.f32.mrb[0].mxu0
    %v2221 = vadd.f32 0.0, %v2220
    %v2222 = vpop.f32.mrb[0].mxu0
    %v2223 = vadd.f32 0.0, %v2222
    %2224 = vdwg.mxu0
    %2225 = vmatprep.subr.bf16.mxu0 %v1099
    %2226 = vmatpush1.bf16.msra.mxu0 %v1098
    %2227 = vmatprep.subr.bf16.mxu0 %v1131
    %2228 = vmatpush1.bf16.msra.mxu0 %v1130
    %2229 = vmatprep.subr.bf16.mxu0 %v1163
    %2230 = vmatpush1.bf16.msra.mxu0 %v1162
    %2231 = vmatprep.subr.bf16.mxu0 %v1195
    %2232 = vmatpush1.bf16.msra.mxu0 %v1194
    %2233 = vmatprep.subr.bf16.mxu0 %v1227
    %2234 = vmatpush1.bf16.msra.mxu0 %v1226
    %2235 = vmatprep.subr.bf16.mxu0 %v1259
    %2236 = vmatpush1.bf16.msra.mxu0 %v1258
    %2237 = vmatprep.subr.bf16.mxu0 %v1291
    %2238 = vmatpush1.bf16.msra.mxu0 %v1290
    %2239 = vmatprep.subr.bf16.mxu0 %v1323
    %2240 = vmatpush1.bf16.msra.mxu0 %v1322
    %2241 = vmatprep.subr.bf16.mxu0 0
    %2242 = vmatpush1.bf16.msra.mxu0 0
    %2243 = vmatprep.subr.bf16.mxu0 0
    %2244 = vmatpush1.bf16.msra.mxu0 0
    %2245 = vmatprep.subr.bf16.mxu0 0
    %2246 = vmatpush1.bf16.msra.mxu0 0
    %2247 = vmatprep.subr.bf16.mxu0 0
    %2248 = vmatpush1.bf16.msra.mxu0 0
    %2249 = vmatprep.subr.bf16.mxu0 0
    %2250 = vmatpush1.bf16.msra.mxu0 0
    %2251 = vmatprep.subr.bf16.mxu0 0
    %2252 = vmatpush1.bf16.msra.mxu0 0
    %2253 = vmatprep.subr.bf16.mxu0 0
    %2254 = vmatpush1.bf16.msra.mxu0 0
    %2255 = vmatprep.subr.bf16.mxu0 0
    %2256 = vmatpush1.bf16.msra.mxu0 0
    %2257 = vmatprep.mubr.bf16.mxu0 0
    %2258 = vmatmul.mubr.bf16.gmra.mrb[0].mxu0 %v43
    %v2259 = vpop.f32.mrb[0].mxu0
    %v2260 = vadd.f32 0.0, %v2259
    %v2261 = vpop.f32.mrb[0].mxu0
    %v2262 = vadd.f32 0.0, %v2261
    %v2263 = vpop.f32.mrb[0].mxu0
    %v2264 = vadd.f32 0.0, %v2263
    %v2265 = vpop.f32.mrb[0].mxu0
    %v2266 = vadd.f32 0.0, %v2265
    %2267 = vdwg.mxu0
    %2268 = vst [vmem:[#allocation5] sm:$0xff] %v1615
    %2269 = vst [vmem:[#allocation5 + $0x8] sm:$0xff] %v1617
    %2270 = vst [vmem:[#allocation5 + $0x10] sm:$0xff] %v1658
    %2271 = vst [vmem:[#allocation5 + $0x18] sm:$0xff] %v1660
    %2272 = vst [vmem:[#allocation5 + $0x20] sm:$0xff] %v1701
    %2273 = vst [vmem:[#allocation5 + $0x28] sm:$0xff] %v1703
    %2274 = vst [vmem:[#allocation5 + $0x30] sm:$0xff] %v1744
    %2275 = vst [vmem:[#allocation5 + $0x38] sm:$0xff] %v1746
    %2276 = vst [vmem:[#allocation5 + $0x40] sm:$0xff] %v1787
    %2277 = vst [vmem:[#allocation5 + $0x48] sm:$0xff] %v1789
    %2278 = vst [vmem:[#allocation5 + $0x50] sm:$0xff] %v1830
    %2279 = vst [vmem:[#allocation5 + $0x58] sm:$0xff] %v1832
    %2280 = vst [vmem:[#allocation5 + $0x60] sm:$0xff] %v1873
    %2281 = vst [vmem:[#allocation5 + $0x68] sm:$0xff] %v1875
    %2282 = vst [vmem:[#allocation5 + $0x70] sm:$0xff] %v1916
    %2283 = vst [vmem:[#allocation5 + $0x78] sm:$0xff] %v1918
    %2284 = vst [vmem:[#allocation5 + $0x80] sm:$0xff] %v1959
    %2285 = vst [vmem:[#allocation5 + $0x88] sm:$0xff] %v1961
    %2286 = vst [vmem:[#allocation5 + $0x90] sm:$0xff] %v2002
    %2287 = vst [vmem:[#allocation5 + $0x98] sm:$0xff] %v2004
    %2288 = vst [vmem:[#allocation5 + $0xa0] sm:$0xff] %v2045
    %2289 = vst [vmem:[#allocation5 + $0xa8] sm:$0xff] %v2047
    %2290 = vst [vmem:[#allocation5 + $0xb0] sm:$0xff] %v2088
    %2291 = vst [vmem:[#allocation5 + $0xb8] sm:$0xff] %v2090
    %2292 = vst [vmem:[#allocation5 + $0xc0] sm:$0xff] %v2131
    %2293 = vst [vmem:[#allocation5 + $0xc8] sm:$0xff] %v2133
    %2294 = vst [vmem:[#allocation5 + $0xd0] sm:$0xff] %v2174
    %2295 = vst [vmem:[#allocation5 + $0xd8] sm:$0xff] %v2176
    %2296 = vst [vmem:[#allocation5 + $0xe0] sm:$0xff] %v2217
    %2297 = vst [vmem:[#allocation5 + $0xe8] sm:$0xff] %v2219
    %2298 = vst [vmem:[#allocation5 + $0xf0] sm:$0xff] %v2260
    %2299 = vst [vmem:[#allocation5 + $0xf8] sm:$0xff] %v2262
    %2300 = vst [vmem:[#allocation5 + $0x100] sm:$0xff] %v1619
    %2301 = vst [vmem:[#allocation5 + $0x108] sm:$0xff] %v1621
    %2302 = vst [vmem:[#allocation5 + $0x110] sm:$0xff] %v1662
    %2303 = vst [vmem:[#allocation5 + $0x118] sm:$0xff] %v1664
    %2304 = vst [vmem:[#allocation5 + $0x120] sm:$0xff] %v1705
    %2305 = vst [vmem:[#allocation5 + $0x128] sm:$0xff] %v1707
    %2306 = vst [vmem:[#allocation5 + $0x130] sm:$0xff] %v1748
    %2307 = vst [vmem:[#allocation5 + $0x138] sm:$0xff] %v1750
    %2308 = vst [vmem:[#allocation5 + $0x140] sm:$0xff] %v1791
    %2309 = vst [vmem:[#allocation5 + $0x148] sm:$0xff] %v1793
    %2310 = vst [vmem:[#allocation5 + $0x150] sm:$0xff] %v1834
    %2311 = vst [vmem:[#allocation5 + $0x158] sm:$0xff] %v1836
    %2312 = vst [vmem:[#allocation5 + $0x160] sm:$0xff] %v1877
    %2313 = vst [vmem:[#allocation5 + $0x168] sm:$0xff] %v1879
    %2314 = vst [vmem:[#allocation5 + $0x170] sm:$0xff] %v1920
    %2315 = vst [vmem:[#allocation5 + $0x178] sm:$0xff] %v1922
    %2316 = vst [vmem:[#allocation5 + $0x180] sm:$0xff] %v1963
    %2317 = vst [vmem:[#allocation5 + $0x188] sm:$0xff] %v1965
    %2318 = vst [vmem:[#allocation5 + $0x190] sm:$0xff] %v2006
    %2319 = vst [vmem:[#allocation5 + $0x198] sm:$0xff] %v2008
    %2320 = vst [vmem:[#allocation5 + $0x1a0] sm:$0xff] %v2049
    %2321 = vst [vmem:[#allocation5 + $0x1a8] sm:$0xff] %v2051
    %2322 = vst [vmem:[#allocation5 + $0x1b0] sm:$0xff] %v2092
    %2323 = vst [vmem:[#allocation5 + $0x1b8] sm:$0xff] %v2094
    %2324 = vst [vmem:[#allocation5 + $0x1c0] sm:$0xff] %v2135
    %2325 = vst [vmem:[#allocation5 + $0x1c8] sm:$0xff] %v2137
    %2326 = vst [vmem:[#allocation5 + $0x1d0] sm:$0xff] %v2178
    %2327 = vst [vmem:[#allocation5 + $0x1d8] sm:$0xff] %v2180
    %2328 = vst [vmem:[#allocation5 + $0x1e0] sm:$0xff] %v2221
    %2329 = vst [vmem:[#allocation5 + $0x1e8] sm:$0xff] %v2223
    %2330 = vst [vmem:[#allocation5 + $0x1f0] sm:$0xff] %v2264
    %2331 = vst [vmem:[#allocation5 + $0x1f8] sm:$0xff] %v2266
    // Predicated region
    $region14: #{tpu_custom_call.1} parent=1 // pred_check
      _
    $region15: #{tpu_custom_call.1} parent=1 // pred_check_branch
      %2333 = sbr.rel (0) target = $region17
    $region16: #{tpu_custom_call.1} parent=1 // pred_region
      %s2335 = ssub.s32 8192, 8192
      %2336 = vsyncadd [#allocation4], %s2335
      %s2337 = sshll.u32 [#allocation5], 4
      %s2338 = int_to_ptr.vmem [resolvable:$true] %s2337
      %2343 = dma.vmem_to_hbm [thread:$0]  %s2338, 8192, %s2, [#allocation4], 4096, 4096, 256
    $region17: #{tpu_custom_call.1} parent=1 // pred_fallthru
      _
    // Predicated region
    $region18: #{tpu_custom_call.1} parent=1 // pred_check
      _
    $region19: #{tpu_custom_call.1} parent=1 // pred_check_branch
      %2345 = sbr.rel (0) target = $region21
    $region20: #{tpu_custom_call.1} parent=1 // pred_region
      %2346 = dma.done [#allocation4], 8192
    $region21: #{tpu_custom_call.1} parent=1 // pred_fallthru
      _
    %2347 = vsyncpa [#allocation3], 1
    %2348 = vsyncpa [#allocation4], 1

</llo_original>
